<compile_context>
chip_gen: v7x
topology: tpu7x:2x2x1
jax: 0.10.0
libtpu: 0.0.40
codegen_flags: <defaults>
</compile_context>

<pallas_src>
import jax
import jax.numpy as jnp
import numpy as np
from jax.experimental import pallas as pl
from jax.experimental.pallas import tpu as pltpu


def _round_up(x, m):
    return ((x + m - 1) // m) * m


# ---------------------------------------------------------------------------
# Kernel body (built per (x_resident, tv) configuration)
# ---------------------------------------------------------------------------
def _make_kernel(x_resident, tv):
    def kernel(x_ref, adj_ref, w_ref, fcw_ref, fcb_ref, out_ref, z_acc, h_acc):
        """Grid: (d_tile [parallel], a, v2_tile, v1_tile) — v1 innermost."""
        a = pl.program_id(1)
        j = pl.program_id(2)          # v2 tile (cols of X@adj_i / rows of W_i)
        k = pl.program_id(3)          # v1 tile (contraction dim of X@adj_i)
        na = pl.num_programs(1)
        nj = pl.num_programs(2)
        nk = pl.num_programs(3)

        if x_resident:
            # X is VMEM-resident for the whole d-tile; slice the v1 chunk here.
            x_tile = x_ref[:, pl.ds(pl.multiple_of(k * tv, tv), tv)]
        else:
            x_tile = x_ref[...]

        # Z[d, v2] (+)= X[d, v1] @ adj_a[v1, v2]   (bf16 MXU, f32 accumulate)
        prod = jnp.dot(x_tile, adj_ref[...], preferred_element_type=jnp.float32)

        @pl.when(k == 0)
        def _z_write():                      # write-on-first-step (no zero fill)
            z_acc[...] = prod

        @pl.when(k > 0)
        def _z_accum():
            z_acc[...] += prod

        # Flush the finished Z tile into fused-H:  h (+)= Z_f32 @ W_a_f32[v2, :]
        # Kept in f32: Z entries are O(V)-scale sums (inputs-only quantization).
        @pl.when(k == nk - 1)
        def _flush():
            zw = jnp.dot(z_acc[...], w_ref[...].astype(jnp.float32),
                         preferred_element_type=jnp.float32)
            first = jnp.logical_and(a == 0, j == 0)

            @pl.when(first)
            def _h_write():
                h_acc[...] = zw

            @pl.when(jnp.logical_not(first))
            def _h_accum():
                h_acc[...] += zw

        # Final fc (f32): out = fused_H @ fc_w + fc_b — one lane-dense store.
        @pl.when(jnp.logical_and(a == na - 1,
                                 jnp.logical_and(j == nj - 1, k == nk - 1)))
        def _finalize():
            out = jnp.dot(h_acc[...], fcw_ref[...],
                          preferred_element_type=jnp.float32) + fcb_ref[...]
            out_ref[...] = out.astype(out_ref.dtype)

    return kernel


# ---------------------------------------------------------------------------
# Tiling plans & VMEM accounting
# ---------------------------------------------------------------------------
def _plan_vocab(V, H, O):
    """Lane-dense padding for the vocab / hidden / out dims; large tv to amortize
    per-grid-step overhead (adj tile at tv=512 is only 512 KiB per buffer)."""
    tv = min(512, _round_up(V, 128))
    Vp = _round_up(V, tv)
    Hp = _round_up(H, 128)
    Op = _round_up(O, 128)
    return Vp, tv, Hp, Op


def _plan_docs(D):
    """Pick (Dp, td).  Large td drives the adjacency-stream arithmetic intensity
    (td FLOPs/byte) past the HBM ridge, but keep >= 2 d-tiles when D permits so
    v7x's second TensorCore gets work on the parallel axis.  td is always a
    multiple of 16 (bf16 sublane pack)."""
    if D >= 1024:
        td = 512
    elif D >= 256:
        td = _round_up(-(-D // 2), 128)      # ~two tiles of >= 128
    elif D >= 32:
        td = _round_up(-(-D // 2), 16)       # two tiles, bf16 pack-aligned
    else:
        td = _round_up(max(D, 8), 16)
    Dp = _round_up(D, td)
    return Dp, td


def _vmem_bytes(td, tv, Vp, Hp, Op, x_resident):
    """Pipelined-buffer + scratch estimate (fcw/fcb double buffers included)."""
    x = 2 * td * (Vp if x_resident else tv) * 2      # bf16, double-buffered
    adj = 2 * tv * tv * 2
    w = 2 * tv * Hp * 2
    fcw = 2 * Hp * Op * 4                            # f32, constant index map
    fcb = 2 * Op * 4
    out = 2 * td * Op * 4
    scratch = td * tv * 4 + td * Hp * 4              # z_acc + h_acc (f32)
    return x + adj + w + fcw + fcb + out + scratch


_XRES_VMEM_BUDGET = 24 * 1024 * 1024   # headroom under v7x's 64 MiB physical VMEM


# ---------------------------------------------------------------------------
# One-time parameter preparation (module constants) + per-call forward
# ---------------------------------------------------------------------------
def prepare_vgcn_params(vocab_adj, W_vh, fc_w, fc_b):
    """Pad + cast the module constants ONCE (keeps the A*V^2 padded bf16 copy
    out of the per-call hot path)."""
    A, V, _ = vocab_adj.shape
    H = W_vh.shape[-1]
    O = fc_w.shape[-1]
    Vp, tv, Hp, Op = _plan_vocab(V, H, O)

    cdt = jnp.bfloat16   # MXU streaming dtype for adj / W / X; accumulation is f32
    adj_p = jnp.zeros((A, Vp, Vp), cdt).at[:, :V, :V].set(vocab_adj.astype(cdt))
    w_p = jnp.zeros((A, Vp, Hp), cdt).at[:, :V, :H].set(W_vh.astype(cdt))
    fcw_p = jnp.zeros((Hp, Op), jnp.float32).at[:H, :O].set(fc_w.astype(jnp.float32))
    fcb_p = jnp.zeros((1, Op), jnp.float32).at[0, :O].set(fc_b.astype(jnp.float32))
    return dict(adj=adj_p, w=w_p, fcw=fcw_p, fcb=fcb_p,
                A=A, V=V, Vp=Vp, tv=tv, H=H, Hp=Hp, O=O, Op=Op)


def vocab_graph_convolution(params, X_dv):
    """out[D, O] = (sum_i X_dv @ adj_i @ W_i) @ fc_w + fc_b."""
    A, V, Vp, tv = params["A"], params["V"], params["Vp"], params["tv"]
    Hp, Op, O = params["Hp"], params["Op"], params["O"]
    D = X_dv.shape[0]
    Dp, td = _plan_docs(D)

    x_p = jnp.zeros((Dp, Vp), jnp.bfloat16).at[:D, :V].set(
        X_dv.astype(jnp.bfloat16))

    # X resident per d-tile unless that blows the (v7x-safe) VMEM budget.
    x_resident = _vmem_bytes(td, tv, Vp, Hp, Op, True) <= _XRES_VMEM_BUDGET
    vmem_est = _vmem_bytes(td, tv, Vp, Hp, Op, x_resident)
    vmem_limit = int(min(64 << 20, max(32 << 20, vmem_est * 5 // 4 + (2 << 20))))

    nd, nj, nk = Dp // td, Vp // tv, Vp // tv
    grid = (nd, A, nj, nk)

    if x_resident:
        # Constant over (a, j, k) => fetched once per d-tile by the pipeline.
        x_spec = pl.BlockSpec((td, Vp), lambda d, a, j, k: (d, 0))
        x_read_bytes = Dp * Vp * 2
    else:
        x_spec = pl.BlockSpec((td, tv), lambda d, a, j, k: (d, k))
        x_read_bytes = nd * A * nj * nk * td * tv * 2

    # Advisory cost hint: count the *streamed* traffic (adj/W re-read per d-tile).
    cost = pl.CostEstimate(
        flops=2 * Dp * Vp * Vp * A + 2 * Dp * Vp * Hp * A + 2 * Dp * Hp * Op,
        transcendentals=0,
        bytes_accessed=(nd * A * Vp * Vp * 2        # adjacency, streamed per d-tile
                        + nd * A * Vp * Hp * 2      # W, streamed per d-tile
                        + x_read_bytes
                        + Hp * Op * 4 + Op * 4      # fc weight / bias (once)
                        + Dp * Op * 4),             # output
    )

    grid_spec = pltpu.PrefetchScalarGridSpec(
        num_scalar_prefetch=0,
        grid=grid,
        in_specs=[
            x_spec,
            # adj_a[v1_tile, v2_tile]; leading A dim squeezed out of the kernel view
            pl.BlockSpec((pl.Squeezed(), tv, tv), lambda d, a, j, k: (a, k, j)),
            # W_a[v2_tile, :]
            pl.BlockSpec((pl.Squeezed(), tv, Hp), lambda d, a, j, k: (a, j, 0)),
            # fc weight / bias: grid-invariant (constant index map => fetched once)
            pl.BlockSpec((Hp, Op), lambda d, a, j, k: (0, 0)),
            pl.BlockSpec((1, Op), lambda d, a, j, k: (0, 0)),
        ],
        out_specs=pl.BlockSpec((td, Op), lambda d, a, j, k: (d, 0)),
        scratch_shapes=[
            pltpu.VMEM((td, tv), jnp.float32),   # Z accumulator (X @ adj tile)
            pltpu.VMEM((td, Hp), jnp.float32),   # fused-H accumulator
        ],
    )

    out_p = pl.pallas_call(
        _make_kernel(x_resident, tv),
        out_shape=jax.ShapeDtypeStruct((Dp, Op), jnp.float32),
        grid_spec=grid_spec,
        compiler_params=pltpu.CompilerParams(
            dimension_semantics=("parallel", "arbitrary", "arbitrary", "arbitrary"),
            vmem_limit_bytes=vmem_limit),
        cost_estimate=cost,
    )(x_p, params["adj"], params["w"], params["fcw"], params["fcb"])

    return out_p[:D, :O]


# ---------------------------------------------------------------------------
# Reference & demo
# ---------------------------------------------------------------------------
def _reference(vocab_adj, W_vh, X_dv, fc_w, fc_b):
    """Module-order f32 reference: sum_i X @ (adj_i @ W_i), then fc."""
    fused = None
    for i in range(vocab_adj.shape[0]):
        h_vh = vocab_adj[i] @ W_vh[i]
        h_dh = X_dv @ h_vh
        fused = h_dh if fused is None else fused + h_dh
    return fused @ fc_w + fc_b[None, :]


if __name__ == "__main__":
    # Small, module-consistent (deliberately non-aligned) shapes:
    # docs D, vocab V, hidden H, out O, num_adj A.
    D, V, H, O, A = 120, 500, 96, 64, 2

    key = jax.random.PRNGKey(0)
    k_adj, k_x, k_w, k_fcw, k_fcb = jax.random.split(key, 5)

    # W{i}_vh: kaiming_uniform_(a=sqrt(5)) -> U(-1/sqrt(fan_in), 1/sqrt(fan_in))
    bound = 1.0 / np.sqrt(H)
    W_vh = jax.random.uniform(k_w, (A, V, H), jnp.float32, -bound, bound)
    fc_w = jax.random.uniform(k_fcw, (H, O), jnp.float32, -bound, bound)
    fc_b = jax.random.uniform(k_fcb, (O,), jnp.float32, -bound, bound)

    vocab_adj = jax.random.uniform(k_adj, (A, V, V), jnp.float32)
    X_dv = jax.random.normal(k_x, (D, V), jnp.float32)

    params = prepare_vgcn_params(vocab_adj, W_vh, fc_w, fc_b)  # one-time pad/cast
    out = vocab_graph_convolution(params, X_dv)
    out = jax.block_until_ready(out)

    # Reference in f32 on the same bf16-quantized *inputs* (adj / W / X) the
    # kernel consumes; fc weights stay f32 in both paths.
    q = lambda a: a.astype(jnp.bfloat16).astype(jnp.float32)
    ref = _reference(q(vocab_adj), q(W_vh), q(X_dv), fc_w, fc_b)
    np.testing.assert_allclose(np.asarray(out), np.asarray(ref), rtol=2e-2, atol=2e-1)
    print("KERNEL_OK")
</pallas_src>

<mosaic_0001>
module attributes {stable_mosaic.version = 11 : i64} {
  func.func @kernel(%arg0: i32, %arg1: i32, %arg2: i32, %arg3: i32, %arg4: memref<64x512xbf16, #tpu.memory_space<vmem>>, %arg5: memref<1x512x512xbf16, #tpu.memory_space<vmem>>, %arg6: memref<1x512x128xbf16, #tpu.memory_space<vmem>>, %arg7: memref<128x128xf32, #tpu.memory_space<vmem>>, %arg8: memref<1x128xf32, #tpu.memory_space<vmem>>, %arg9: memref<64x128xf32, #tpu.memory_space<vmem>>, %arg10: memref<64x512xf32, #tpu.memory_space<vmem>>, %arg11: memref<64x128xf32, #tpu.memory_space<vmem>>) attributes {dimension_semantics = [#tpu.dimension_semantics<parallel>, #tpu.dimension_semantics<arbitrary>, #tpu.dimension_semantics<arbitrary>, #tpu.dimension_semantics<arbitrary>], iteration_bounds = array<i64: 2, 2, 1, 1>, scalar_prefetch = 0 : i64, scratch_operands = 2 : i64, tpu.core_type = #tpu.core_type<tc>, window_params = [{transform_indices = @transform_0, window_bounds = array<i64: 64, 512>}, {transform_indices = @transform_1, window_bounds = array<i64: 1, 512, 512>}, {transform_indices = @transform_2, window_bounds = array<i64: 1, 512, 128>}, {pipeline_mode = #tpu.pipeline_mode<synchronous>, transform_indices = @transform_3, window_bounds = array<i64: 128, 128>}, {pipeline_mode = #tpu.pipeline_mode<synchronous>, transform_indices = @transform_4, window_bounds = array<i64: 1, 128>}, {transform_indices = @transform_5, window_bounds = array<i64: 64, 128>}]} {
    %c512_i32 = arith.constant 512 : i32
    %0 = arith.muli %arg3, %c512_i32 : i32
    %1 = tpu.assume_multiple %0, 512 : i32
    %c0 = arith.constant 0 : index
    %2 = arith.index_cast %1 : i32 to index
    %3 = vector.load %arg4[%c0, %2] : memref<64x512xbf16, #tpu.memory_space<vmem>>, vector<64x512xbf16>
    %c0_0 = arith.constant 0 : index
    %c0_1 = arith.constant 0 : index
    %c0_2 = arith.constant 0 : index
    %4 = vector.load %arg5[%c0_0, %c0_1, %c0_2] : memref<1x512x512xbf16, #tpu.memory_space<vmem>>, vector<1x512x512xbf16>
    %5 = vector.shape_cast %4 : vector<1x512x512xbf16> to vector<512x512xbf16>
    %cst = arith.constant dense<0.000000e+00> : vector<64x512xf32>
    %6 = tpu.matmul %3, %5, %cst {dimension_numbers = #tpu.dot_dimension_numbers<[1], [0], [0], [1], [0, 0, 1, 1], [], []>} : vector<64x512xbf16>, vector<512x512xbf16>, vector<64x512xf32> -> vector<64x512xf32>
    %c0_i32 = arith.constant 0 : i32
    %7 = arith.cmpi eq, %arg3, %c0_i32 : i32
    %8 = arith.extui %7 : i1 to i32
    %c0_i32_3 = arith.constant 0 : i32
    %9 = arith.cmpi ne, %8, %c0_i32_3 : i32
    scf.if %9 {
      %c0_11 = arith.constant 0 : index
      %c0_12 = arith.constant 0 : index
      %23 = vector.load %arg10[%c0_11, %c0_12] : memref<64x512xf32, #tpu.memory_space<vmem>>, vector<64x512xf32>
      tpu.vector_store %arg10[%c0_11, %c0_12], %6 {strides = array<i32>} : memref<64x512xf32, #tpu.memory_space<vmem>>, vector<64x512xf32>,
    } else {
    }
    %c0_i32_4 = arith.constant 0 : i32
    %10 = arith.cmpi sgt, %arg3, %c0_i32_4 : i32
    %11 = arith.extui %10 : i1 to i32
    %c0_i32_5 = arith.constant 0 : i32
    %12 = arith.cmpi ne, %11, %c0_i32_5 : i32
    scf.if %12 {
      %c0_11 = arith.constant 0 : index
      %c0_12 = arith.constant 0 : index
      %23 = vector.load %arg10[%c0_11, %c0_12] : memref<64x512xf32, #tpu.memory_space<vmem>>, vector<64x512xf32>
      %24 = arith.addf %23, %6 : vector<64x512xf32>
      %c0_13 = arith.constant 0 : index
      %c0_14 = arith.constant 0 : index
      %25 = vector.load %arg10[%c0_13, %c0_14] : memref<64x512xf32, #tpu.memory_space<vmem>>, vector<64x512xf32>
      tpu.vector_store %arg10[%c0_13, %c0_14], %24 {strides = array<i32>} : memref<64x512xf32, #tpu.memory_space<vmem>>, vector<64x512xf32>,
    } else {
    }
    %c0_i32_6 = arith.constant 0 : i32
    %13 = arith.cmpi eq, %arg3, %c0_i32_6 : i32
    %14 = arith.extui %13 : i1 to i32
    %c0_i32_7 = arith.constant 0 : i32
    %15 = arith.cmpi ne, %14, %c0_i32_7 : i32
    scf.if %15 {
      %c0_11 = arith.constant 0 : index
      %c0_12 = arith.constant 0 : index
      %23 = vector.load %arg10[%c0_11, %c0_12] : memref<64x512xf32, #tpu.memory_space<vmem>>, vector<64x512xf32>
      %c0_13 = arith.constant 0 : index
      %c0_14 = arith.constant 0 : index
      %c0_15 = arith.constant 0 : index
      %24 = vector.load %arg6[%c0_13, %c0_14, %c0_15] : memref<1x512x128xbf16, #tpu.memory_space<vmem>>, vector<1x512x128xbf16>
      %25 = vector.shape_cast %24 : vector<1x512x128xbf16> to vector<512x128xbf16>
      %26 = arith.extf %25 : vector<512x128xbf16> to vector<512x128xf32>
      %cst_16 = arith.constant dense<0.000000e+00> : vector<64x128xf32>
      %27 = tpu.matmul %23, %26, %cst_16 {dimension_numbers = #tpu.dot_dimension_numbers<[1], [0], [0], [1], [0, 0, 1, 1], [], []>} : vector<64x512xf32>, vector<512x128xf32>, vector<64x128xf32> -> vector<64x128xf32>
      %c0_i32_17 = arith.constant 0 : i32
      %28 = arith.cmpi eq, %arg1, %c0_i32_17 : i32
      %c0_i32_18 = arith.constant 0 : i32
      %29 = arith.cmpi eq, %arg2, %c0_i32_18 : i32
      %30 = arith.andi %28, %29 : i1
      %31 = arith.extui %30 : i1 to i32
      %c0_i32_19 = arith.constant 0 : i32
      %32 = arith.cmpi ne, %31, %c0_i32_19 : i32
      scf.if %32 {
        %c0_21 = arith.constant 0 : index
        %c0_22 = arith.constant 0 : index
        %36 = vector.load %arg11[%c0_21, %c0_22] : memref<64x128xf32, #tpu.memory_space<vmem>>, vector<64x128xf32>
        tpu.vector_store %arg11[%c0_21, %c0_22], %27 {strides = array<i32>} : memref<64x128xf32, #tpu.memory_space<vmem>>, vector<64x128xf32>,
      } else {
      }
      %true = arith.constant true
      %33 = arith.xori %30, %true : i1
      %34 = arith.extui %33 : i1 to i32
      %c0_i32_20 = arith.constant 0 : i32
      %35 = arith.cmpi ne, %34, %c0_i32_20 : i32
      scf.if %35 {
        %c0_21 = arith.constant 0 : index
        %c0_22 = arith.constant 0 : index
        %36 = vector.load %arg11[%c0_21, %c0_22] : memref<64x128xf32, #tpu.memory_space<vmem>>, vector<64x128xf32>
        %37 = arith.addf %36, %27 : vector<64x128xf32>
        %c0_23 = arith.constant 0 : index
        %c0_24 = arith.constant 0 : index
        %38 = vector.load %arg11[%c0_23, %c0_24] : memref<64x128xf32, #tpu.memory_space<vmem>>, vector<64x128xf32>
        tpu.vector_store %arg11[%c0_23, %c0_24], %37 {strides = array<i32>} : memref<64x128xf32, #tpu.memory_space<vmem>>, vector<64x128xf32>,
      } else {
      }
    } else {
    }
    %c1_i32 = arith.constant 1 : i32
    %16 = arith.cmpi eq, %arg1, %c1_i32 : i32
    %c0_i32_8 = arith.constant 0 : i32
    %17 = arith.cmpi eq, %arg2, %c0_i32_8 : i32
    %c0_i32_9 = arith.constant 0 : i32
    %18 = arith.cmpi eq, %arg3, %c0_i32_9 : i32
    %19 = arith.andi %17, %18 : i1
    %20 = arith.andi %16, %19 : i1
    %21 = arith.extui %20 : i1 to i32
    %c0_i32_10 = arith.constant 0 : i32
    %22 = arith.cmpi ne, %21, %c0_i32_10 : i32
    scf.if %22 {
      %c0_11 = arith.constant 0 : index
      %c0_12 = arith.constant 0 : index
      %23 = vector.load %arg11[%c0_11, %c0_12] : memref<64x128xf32, #tpu.memory_space<vmem>>, vector<64x128xf32>
      %c0_13 = arith.constant 0 : index
      %c0_14 = arith.constant 0 : index
      %24 = vector.load %arg7[%c0_13, %c0_14] : memref<128x128xf32, #tpu.memory_space<vmem>>, vector<128x128xf32>
      %cst_15 = arith.constant dense<0.000000e+00> : vector<64x128xf32>
      %25 = tpu.matmul %23, %24, %cst_15 {dimension_numbers = #tpu.dot_dimension_numbers<[1], [0], [0], [1], [0, 0, 1, 1], [], []>} : vector<64x128xf32>, vector<128x128xf32>, vector<64x128xf32> -> vector<64x128xf32>
      %c0_16 = arith.constant 0 : index
      %c0_17 = arith.constant 0 : index
      %26 = vector.load %arg8[%c0_16, %c0_17] : memref<1x128xf32, #tpu.memory_space<vmem>>, vector<1x128xf32>
      %27 = vector.broadcast %26 : vector<1x128xf32> to vector<64x128xf32>
      %28 = arith.addf %25, %27 : vector<64x128xf32>
      %c0_18 = arith.constant 0 : index
      %c0_19 = arith.constant 0 : index
      %29 = vector.load %arg9[%c0_18, %c0_19] : memref<64x128xf32, #tpu.memory_space<vmem>>, vector<64x128xf32>
      tpu.vector_store %arg9[%c0_18, %c0_19], %28 {strides = array<i32>} : memref<64x128xf32, #tpu.memory_space<vmem>>, vector<64x128xf32>,
    } else {
    }
    return
  }
  func.func @transform_0(%arg0: i32, %arg1: i32, %arg2: i32, %arg3: i32) -> (i32, i32) {
    %c0_i32 = arith.constant 0 : i32
    %c0_i32_0 = arith.constant 0 : i32
    return %arg0, %c0_i32 : i32, i32
  }
  func.func @transform_1(%arg0: i32, %arg1: i32, %arg2: i32, %arg3: i32) -> (i32, i32, i32) {
    %c0_i32 = arith.constant 0 : i32
    return %arg1, %arg3, %arg2 : i32, i32, i32
  }
  func.func @transform_2(%arg0: i32, %arg1: i32, %arg2: i32, %arg3: i32) -> (i32, i32, i32) {
    %c0_i32 = arith.constant 0 : i32
    %c0_i32_0 = arith.constant 0 : i32
    return %arg1, %arg2, %c0_i32 : i32, i32, i32
  }
  func.func @transform_3(%arg0: i32, %arg1: i32, %arg2: i32, %arg3: i32) -> (i32, i32) {
    %c0_i32 = arith.constant 0 : i32
    %c0_i32_0 = arith.constant 0 : i32
    %c0_i32_1 = arith.constant 0 : i32
    return %c0_i32, %c0_i32_0 : i32, i32
  }
  func.func @transform_4(%arg0: i32, %arg1: i32, %arg2: i32, %arg3: i32) -> (i32, i32) {
    %c0_i32 = arith.constant 0 : i32
    %c0_i32_0 = arith.constant 0 : i32
    %c0_i32_1 = arith.constant 0 : i32
    return %c0_i32, %c0_i32_0 : i32, i32
  }
  func.func @transform_5(%arg0: i32, %arg1: i32, %arg2: i32, %arg3: i32) -> (i32, i32) {
    %c0_i32 = arith.constant 0 : i32
    %c0_i32_0 = arith.constant 0 : i32
    return %arg0, %c0_i32 : i32, i32
  }
}

</mosaic_0001>

<llo_original>
// kernel: tpu_custom_call.1
$region0: #{tpu_custom_call.1}
  #allocation0 [shape = 'u32[]', space=smem, size = 0x4, offset = 0x4, fixed_abs, tag = 'smem constant byte address 0x4 - core index']
  #allocation1 [shape = 'u32[144,128]{1,0:T(1,128)}', space=vmem, size = 0x12000, scoped, tag = 'internal scratch']
  #allocation2 [shape = 'f32[64,512]{1,0:T(8,128)}', space=vmem, size = 0x20000, scoped, tag = 'scratch operand']
  #allocation3 [shape = 'f32[64,128]{1,0:T(8,128)}', space=vmem, size = 0x8000, scoped, tag = 'scratch operand']
  %s0 = inlined_call_operand.hbm [shape: bf16[128,512], index: 0, kind: input, shape index: {}]
  %s1 = inlined_call_operand.hbm [shape: bf16[2,512,512], index: 1, kind: input, shape index: {}]
  %s2 = inlined_call_operand.hbm [shape: bf16[2,512,128], index: 2, kind: input, shape index: {}]
  %s3 = inlined_call_operand.hbm [shape: f32[128,128], index: 3, kind: input, shape index: {}]
  %s4 = inlined_call_operand.vmem [shape: f32[1,128], index: 4, kind: input, shape index: {}]
  %s5 = inlined_call_operand.hbm [shape: f32[128,128], index: 5, kind: output, shape index: {}]
  %s6 = sld [smem:[#allocation0]]
  $region93: #{tpu_custom_call.1} parent=0
    _
  %s8 = ssub.s32 1, %s6
  %s9 = scalar_select 0, %s8, %s6
  $region1: #{tpu_custom_call.1} parent=0
    #allocation4 [shape = 'u8[131072]{0}', space=vmem, size = 0x20000, scoped, tag = 'input window, operand 0']
    #allocation5 [shape = 's32[2]{0}', space=sflag, size = 0x8, scoped, tag = 'scoped memory for tpu_custom_call.1']
    #allocation6 [shape = 's32[2]{0}', space=sflag, size = 0x8, scoped, tag = 'scoped memory for tpu_custom_call.1']
    #allocation7 [shape = 'u8[1048576]{0}', space=vmem, size = 0x100000, scoped, tag = 'input window, operand 1']
    #allocation8 [shape = 's32[2]{0}', space=sflag, size = 0x8, scoped, tag = 'scoped memory for tpu_custom_call.1']
    #allocation9 [shape = 'u8[262144]{0}', space=vmem, size = 0x40000, scoped, tag = 'input window, operand 2']
    #allocation10 [shape = 'u8[65536]{0}', space=vmem, size = 0x10000, scoped, tag = 'input window, operand 3, single buffered']
    #allocation11 [shape = 's32[1]{0}', space=sflag, size = 0x4, scoped, tag = 'scoped memory for tpu_custom_call.1']
    #allocation12 [shape = 'u8[65536]{0}', space=vmem, size = 0x10000, scoped, tag = 'output window, operand 0']
    %10 = vsyncpa [#allocation5], 0
    %s11 = scalar_lea.sflag [#allocation5], 1
    %12 = vsyncpa %s11, 0
    %13 = vsyncpa [#allocation8], 0
    %s14 = scalar_lea.sflag [#allocation8], 1
    %15 = vsyncpa %s14, 0
    %16 = vsyncpa [#allocation11], 0
    %17 = vsyncpa [#allocation6], 0
    %s18 = scalar_lea.sflag [#allocation6], 1
    %19 = vsyncpa %s18, 0
    loop: start=0, step=1, limit=6
    $region2: #{tpu_custom_call.1} parent=1 // loop_pre_header
      _
    $region3: #{tpu_custom_call.1} parent=1 // loop_header
      %s21 = sphi 0, %s25
      %p22 = scmp.ge.s32.totalorder %s21, 6
      %s28 = sphi 0, %s54
      %s29 = sphi 0, %s50
      %s30 = sphi 0, %s46
      %s31 = sphi 0, %s42
      %s32 = sphi 0, %s28
      %s33 = sphi 0, %s29
      %s34 = sphi 0, %s30
      %s35 = sphi 0, %s31
      %s36 = sphi 0, %s32
      %s37 = sphi 0, %s33
      %s38 = sphi 0, %s34
      %s39 = sphi 0, %s35
      %s57 = sphi 0, %s59
      %s60 = sphi 0, %s57
      %s61 = sphi 0, %s60
      %s77 = sphi 0, %s61
      %s87 = sphi 0, %s89
      %s90 = sphi 0, %s87
      %s91 = sphi 0, %s90
      %s107 = sphi 0, %s91
      %s115 = sphi 0, %s117
      %s118 = sphi 0, %s115
      %s119 = sphi 0, %s118
      %s135 = sphi 0, %s119
      %s139 = sphi 0, %s139
      %s141 = sphi 0, %s139
      %s142 = sphi 0, %s141
      %s156 = sphi 0, %s142
      %s160 = sphi 0, %s160
      %s162 = sphi 0, %s160
      %s163 = sphi 0, %s162
      %s177 = sphi 0, %s163
      %s183 = sphi 0, %s185
      %s186 = sphi 0, %s183
      %s187 = sphi 0, %s186
      %s203 = sphi 0, %s187
    $region4: #{tpu_custom_call.1} parent=1 // loop_header_branch
      %24 = sbr.rel (%p22) target = $region8
    $region5: #{tpu_custom_call.1} parent=1 // loop_body
      %s26 = ssub.s32 %s21, 1
      %s27 = ssub.s32 %s21, 2
      %s40 = sadd.s32 1, %s31
      %p41 = scmp.ge.s32.totalorder %s40, 1
      %s42 = scalar_select %p41, 0, %s40
      %s43 = sadd.s32 1, %s30
      %s44 = scalar_select %p41, %s43, %s30
      %p45 = scmp.ge.s32.totalorder %s44, 1
      %s46 = scalar_select %p45, 0, %s44
      %s47 = sadd.s32 1, %s29
      %s48 = scalar_select %p45, %s47, %s29
      %p49 = scmp.ge.s32.totalorder %s48, 2
      %s50 = scalar_select %p49, 0, %s48
      %s51 = sadd.s32 1, %s28
      %s52 = scalar_select %p49, %s51, %s28
      %p53 = scmp.ge.s32.totalorder %s52, 2
      %s54 = scalar_select %p53, 0, %s52
      %s55 = ssub.s32 %s28, %s54
      %p56 = scmp.eq.s32.totalorder %s55, 0
      %s58 = sadd.s32 %s57, 1
      %s59 = scalar_select %p56, %s57, %s58
      %p62 = pneg %p56
      %p63 = scmp.eq.s32.totalorder %s21, 3
      %p64 = por %p62, %p63
      %p65 = scmp.ne.s32.totalorder %s57, %s60
      %p66 = scmp.eq.s32.totalorder %s21, 0
      %p67 = por %p65, %p66
      %p68 = scmp.ne.s32.totalorder %s57, %s60
      %p69 = scmp.eq.s32.totalorder %s26, 3
      %p70 = por %p68, %p69
      %p71 = scmp.ne.s32.totalorder %s60, %s61
      %p72 = scmp.eq.s32.totalorder %s26, 0
      %p73 = por %p71, %p72
      %p74 = scmp.ne.s32.totalorder %s60, %s61
      %p75 = scmp.eq.s32.totalorder %s27, 3
      %p76 = por %p74, %p75
      %p78 = scmp.ne.s32.totalorder %s61, %s77
      %p79 = scmp.eq.s32.totalorder %s27, 0
      %p80 = por %p78, %p79
      %s81 = ssub.s32 %s29, %s50
      %s82 = ssub.s32 %s31, %s42
      %s83 = sor.u32 %s81, %s82
      %s84 = ssub.s32 %s30, %s46
      %s85 = sor.u32 %s83, %s84
      %p86 = scmp.eq.s32.totalorder %s85, 0
      %s88 = sadd.s32 %s87, 1
      %s89 = scalar_select %p86, %s87, %s88
      %p92 = pneg %p86
      %p93 = scmp.eq.s32.totalorder %s21, 3
      %p94 = por %p92, %p93
      %p95 = scmp.ne.s32.totalorder %s87, %s90
      %p96 = scmp.eq.s32.totalorder %s21, 0
      %p97 = por %p95, %p96
      %p98 = scmp.ne.s32.totalorder %s87, %s90
      %p99 = scmp.eq.s32.totalorder %s26, 3
      %p100 = por %p98, %p99
      %p101 = scmp.ne.s32.totalorder %s90, %s91
      %p102 = scmp.eq.s32.totalorder %s26, 0
      %p103 = por %p101, %p102
      %p104 = scmp.ne.s32.totalorder %s90, %s91
      %p105 = scmp.eq.s32.totalorder %s27, 3
      %p106 = por %p104, %p105
      %p108 = scmp.ne.s32.totalorder %s91, %s107
      %p109 = scmp.eq.s32.totalorder %s27, 0
      %p110 = por %p108, %p109
      %s111 = ssub.s32 %s29, %s50
      %s112 = ssub.s32 %s30, %s46
      %s113 = sor.u32 %s111, %s112
      %p114 = scmp.eq.s32.totalorder %s113, 0
      %s116 = sadd.s32 %s115, 1
      %s117 = scalar_select %p114, %s115, %s116
      %p120 = pneg %p114
      %p121 = scmp.eq.s32.totalorder %s21, 3
      %p122 = por %p120, %p121
      %p123 = scmp.ne.s32.totalorder %s115, %s118
      %p124 = scmp.eq.s32.totalorder %s21, 0
      %p125 = por %p123, %p124
      %p126 = scmp.ne.s32.totalorder %s115, %s118
      %p127 = scmp.eq.s32.totalorder %s26, 3
      %p128 = por %p126, %p127
      %p129 = scmp.ne.s32.totalorder %s118, %s119
      %p130 = scmp.eq.s32.totalorder %s26, 0
      %p131 = por %p129, %p130
      %p132 = scmp.ne.s32.totalorder %s118, %s119
      %p133 = scmp.eq.s32.totalorder %s27, 3
      %p134 = por %p132, %p133
      %p136 = scmp.ne.s32.totalorder %s119, %s135
      %p137 = scmp.eq.s32.totalorder %s27, 0
      %p138 = por %p136, %p137
      %s140 = sadd.s32 %s139, 1
      %p143 = scmp.eq.s32.totalorder %s21, 3
      %p144 = scmp.ne.s32.totalorder %s139, %s141
      %p145 = scmp.eq.s32.totalorder %s21, 0
      %p146 = por %p144, %p145
      %p147 = scmp.ne.s32.totalorder %s139, %s141
      %p148 = scmp.eq.s32.totalorder %s26, 3
      %p149 = por %p147, %p148
      %p150 = scmp.ne.s32.totalorder %s141, %s142
      %p151 = scmp.eq.s32.totalorder %s26, 0
      %p152 = por %p150, %p151
      %p153 = scmp.ne.s32.totalorder %s141, %s142
      %p154 = scmp.eq.s32.totalorder %s27, 3
      %p155 = por %p153, %p154
      %p157 = scmp.ne.s32.totalorder %s142, %s156
      %p158 = scmp.eq.s32.totalorder %s27, 0
      %p159 = por %p157, %p158
      %s161 = sadd.s32 %s160, 1
      %p164 = scmp.eq.s32.totalorder %s21, 3
      %p165 = scmp.ne.s32.totalorder %s160, %s162
      %p166 = scmp.eq.s32.totalorder %s21, 0
      %p167 = por %p165, %p166
      %p168 = scmp.ne.s32.totalorder %s160, %s162
      %p169 = scmp.eq.s32.totalorder %s26, 3
      %p170 = por %p168, %p169
      %p171 = scmp.ne.s32.totalorder %s162, %s163
      %p172 = scmp.eq.s32.totalorder %s26, 0
      %p173 = por %p171, %p172
      %p174 = scmp.ne.s32.totalorder %s162, %s163
      %p175 = scmp.eq.s32.totalorder %s27, 3
      %p176 = por %p174, %p175
      %p178 = scmp.ne.s32.totalorder %s163, %s177
      %p179 = scmp.eq.s32.totalorder %s27, 0
      %p180 = por %p178, %p179
      %s181 = ssub.s32 %s28, %s54
      %p182 = scmp.eq.s32.totalorder %s181, 0
      %s184 = sadd.s32 %s183, 1
      %s185 = scalar_select %p182, %s183, %s184
      %p188 = pneg %p182
      %p189 = scmp.eq.s32.totalorder %s21, 3
      %p190 = por %p188, %p189
      %p191 = scmp.ne.s32.totalorder %s183, %s186
      %p192 = scmp.eq.s32.totalorder %s21, 0
      %p193 = por %p191, %p192
      %p194 = scmp.ne.s32.totalorder %s183, %s186
      %p195 = scmp.eq.s32.totalorder %s26, 3
      %p196 = por %p194, %p195
      %p197 = scmp.ne.s32.totalorder %s186, %s187
      %p198 = scmp.eq.s32.totalorder %s26, 0
      %p199 = por %p197, %p198
      %p200 = scmp.ne.s32.totalorder %s186, %s187
      %p201 = scmp.eq.s32.totalorder %s27, 3
      %p202 = por %p200, %p201
      %p204 = scmp.ne.s32.totalorder %s187, %s203
      %p205 = scmp.eq.s32.totalorder %s27, 0
      %p206 = por %p204, %p205
      %p207 = scmp.le.s32.totalorder 1, %s21
      %p208 = scmp.lt.s32.totalorder %s21, 5
      %p209 = pnand %p207, %p208
      %p210 = pneg %p209
      // Predicated region
      $region9: #{tpu_custom_call.1} parent=5 // pred_check
        _
      $region10: #{tpu_custom_call.1} parent=5 // pred_check_branch
        %212 = sbr.rel (%p209) target = $region12
      $region11: #{tpu_custom_call.1} parent=5 // pred_region
        %s213 = ssub.s32 %s21, 1
        // Predicated region
        $region13: #{tpu_custom_call.1} parent=11 // pred_check
          %p214 = pneg %p152
        $region14: #{tpu_custom_call.1} parent=11 // pred_check_branch
          %216 = sbr.rel (%p214) target = $region16
        $region15: #{tpu_custom_call.1} parent=11 // pred_region
          %s218 = ssub.s32 2048, 2048
          %219 = vsyncadd [#allocation11], %s218
          %s220 = sshll.u32 [#allocation10], 4
          %s221 = int_to_ptr.vmem [resolvable:$true] %s220
          %226 = dma.hbm_to_vmem [thread:$0]  %s3, 2048, %s221, [#allocation11], 128, 128, 8
        $region16: #{tpu_custom_call.1} parent=11 // pred_fallthru
          _
        // Predicated region
        $region17: #{tpu_custom_call.1} parent=11 // pred_check
          %p227 = pneg %p173
        $region18: #{tpu_custom_call.1} parent=11 // pred_check_branch
          %229 = sbr.rel (%p227) target = $region20
        $region19: #{tpu_custom_call.1} parent=11 // pred_region
          _
        $region20: #{tpu_custom_call.1} parent=11 // pred_fallthru
          _
      $region12: #{tpu_custom_call.1} parent=5 // pred_fallthru
        _
      %p230 = scmp.lt.s32.totalorder %s21, 4
      // Predicated region
      $region21: #{tpu_custom_call.1} parent=5 // pred_check
        %p231 = pneg %p230
      $region22: #{tpu_custom_call.1} parent=5 // pred_check_branch
        %233 = sbr.rel (%p231) target = $region24
      $region23: #{tpu_custom_call.1} parent=5 // pred_region
        // Predicated region
        $region25: #{tpu_custom_call.1} parent=23 // pred_check
          %p234 = pneg %p67
        $region26: #{tpu_custom_call.1} parent=23 // pred_check_branch
          %236 = sbr.rel (%p234) target = $region28
        $region27: #{tpu_custom_call.1} parent=23 // pred_region
          %s237 = sand.u32 %s57, 1
          %s238 = scalar_lea.sflag [#allocation5], %s237
          %s239 = sand.u32 %s57, 1
          %s240 = smul.addr %s239, 128
          %s241 = scalar_lea.vmem [#allocation4], %s240
          %s242 = smul.u32 8, %s28
          %s244 = ssub.s32 2048, 2048
          %245 = vsyncadd %s238, %s244
          %s246 = smul.addr %s242, 4
          %s247 = smul.addr %s246, 64
          %s248 = scalar_lea.hbm %s0, %s247
          %s249 = sshll.u32 %s241, 4
          %s250 = int_to_ptr.vmem [resolvable:$true] %s249
          %255 = dma.hbm_to_vmem [thread:$0]  %s248, 2048, %s250, %s238, 256, 256, 16
        $region28: #{tpu_custom_call.1} parent=23 // pred_fallthru
          _
        // Predicated region
        $region29: #{tpu_custom_call.1} parent=23 // pred_check
          %p256 = pneg %p97
        $region30: #{tpu_custom_call.1} parent=23 // pred_check_branch
          %258 = sbr.rel (%p256) target = $region32
        $region31: #{tpu_custom_call.1} parent=23 // pred_region
          %s259 = sand.u32 %s21, 1
          %s260 = scalar_lea.sflag [#allocation8], %s259
          %s261 = sand.u32 %s87, 1
          %s262 = smul.addr %s261, 1024
          %s263 = scalar_lea.vmem [#allocation7], %s262
          %s264 = smul.u32 64, %s31
          %s265 = smul.u32 4, %s30
          %s267 = ssub.s32 16384, 16384
          %268 = vsyncadd %s260, %s267
          %s269 = smul.addr %s264, 4
          %s270 = sadd.s32 %s265, %s269
          %s271 = smul.addr %s29, 256
          %s272 = sadd.s32 %s270, %s271
          %s273 = smul.addr %s272, 64
          %s274 = scalar_lea.hbm %s1, %s273
          %s275 = sshll.u32 %s263, 4
          %s276 = int_to_ptr.vmem [resolvable:$true] %s275
          %281 = dma.hbm_to_vmem [thread:$0]  %s274, 16384, %s276, %s260, 256, 256, 16
        $region32: #{tpu_custom_call.1} parent=23 // pred_fallthru
          _
        // Predicated region
        $region33: #{tpu_custom_call.1} parent=23 // pred_check
          %p282 = pneg %p125
        $region34: #{tpu_custom_call.1} parent=23 // pred_check_branch
          %284 = sbr.rel (%p282) target = $region36
        $region35: #{tpu_custom_call.1} parent=23 // pred_region
          %s285 = sand.u32 %s21, 1
          %s286 = scalar_lea.sflag [#allocation8], %s285
          %s287 = sand.u32 %s115, 1
          %s288 = smul.addr %s287, 256
          %s289 = scalar_lea.vmem [#allocation9], %s288
          %s290 = smul.u32 64, %s30
          %s292 = ssub.s32 4096, 4096
          %293 = vsyncadd %s286, %s292
          %s294 = smul.addr %s29, 64
          %s295 = sadd.s32 %s290, %s294
          %s296 = smul.addr %s295, 64
          %s297 = scalar_lea.hbm %s2, %s296
          %s298 = sshll.u32 %s289, 4
          %s299 = int_to_ptr.vmem [resolvable:$true] %s298
          %304 = dma.hbm_to_vmem [thread:$0]  %s297, 4096, %s299, %s286, 64, 64, 4
        $region36: #{tpu_custom_call.1} parent=23 // pred_fallthru
          _
      $region24: #{tpu_custom_call.1} parent=5 // pred_fallthru
        _
      %p305 = scmp.le.s32.totalorder 1, %s21
      %p306 = scmp.lt.s32.totalorder %s21, 5
      %p307 = pnand %p305, %p306
      %p308 = pneg %p307
      // Predicated region
      $region37: #{tpu_custom_call.1} parent=5 // pred_check
        _
      $region38: #{tpu_custom_call.1} parent=5 // pred_check_branch
        %310 = sbr.rel (%p307) target = $region40
      $region39: #{tpu_custom_call.1} parent=5 // pred_region
        %s311 = ssub.s32 %s21, 1
        %s312 = sand.u32 %s60, 1
        %s313 = scalar_lea.sflag [#allocation5], %s312
        %s314 = sand.u32 %s60, 1
        %s315 = smul.addr %s314, 128
        %s316 = scalar_lea.vmem [#allocation4], %s315
        // Predicated region
        $region41: #{tpu_custom_call.1} parent=39 // pred_check
          %p317 = pneg %p73
        $region42: #{tpu_custom_call.1} parent=39 // pred_check_branch
          %319 = sbr.rel (%p317) target = $region44
        $region43: #{tpu_custom_call.1} parent=39 // pred_region
          %320 = dma.done %s313, 2048
        $region44: #{tpu_custom_call.1} parent=39 // pred_fallthru
          _
        %s321 = sand.u32 %s26, 1
        %s322 = scalar_lea.sflag [#allocation8], %s321
        %s323 = sand.u32 %s90, 1
        %s324 = smul.addr %s323, 1024
        %s325 = scalar_lea.vmem [#allocation7], %s324
        // Predicated region
        $region45: #{tpu_custom_call.1} parent=39 // pred_check
          %p326 = pneg %p103
        $region46: #{tpu_custom_call.1} parent=39 // pred_check_branch
          %328 = sbr.rel (%p326) target = $region48
        $region47: #{tpu_custom_call.1} parent=39 // pred_region
          %329 = dma.done %s322, 16384
        $region48: #{tpu_custom_call.1} parent=39 // pred_fallthru
          _
        %s330 = sand.u32 %s26, 1
        %s331 = scalar_lea.sflag [#allocation8], %s330
        %s332 = sand.u32 %s118, 1
        %s333 = smul.addr %s332, 256
        %s334 = scalar_lea.vmem [#allocation9], %s333
        // Predicated region
        $region49: #{tpu_custom_call.1} parent=39 // pred_check
          %p335 = pneg %p131
        $region50: #{tpu_custom_call.1} parent=39 // pred_check_branch
          %337 = sbr.rel (%p335) target = $region52
        $region51: #{tpu_custom_call.1} parent=39 // pred_region
          %338 = dma.done %s331, 4096
        $region52: #{tpu_custom_call.1} parent=39 // pred_fallthru
          _
        // Predicated region
        $region53: #{tpu_custom_call.1} parent=39 // pred_check
          %p339 = pneg %p152
        $region54: #{tpu_custom_call.1} parent=39 // pred_check_branch
          %341 = sbr.rel (%p339) target = $region56
        $region55: #{tpu_custom_call.1} parent=39 // pred_region
          %342 = dma.done [#allocation11], 2048
        $region56: #{tpu_custom_call.1} parent=39 // pred_fallthru
          _
        %s343 = sand.u32 %s60, 1
        %s344 = scalar_lea.sflag [#allocation5], %s343
        %s345 = sand.u32 %s60, 1
        %s346 = smul.addr %s345, 128
        %s347 = scalar_lea.vmem [#allocation4], %s346
        %p348 = pneg %p73
        %p349 = pneg %p70
        %s350 = sand.u32 %s26, 1
        %s351 = scalar_lea.sflag [#allocation8], %s350
        %s352 = sand.u32 %s90, 1
        %s353 = smul.addr %s352, 1024
        %s354 = scalar_lea.vmem [#allocation7], %s353
        %p355 = pneg %p103
        %p356 = pneg %p100
        %s357 = sand.u32 %s26, 1
        %s358 = scalar_lea.sflag [#allocation8], %s357
        %s359 = sand.u32 %s118, 1
        %s360 = smul.addr %s359, 256
        %s361 = scalar_lea.vmem [#allocation9], %s360
        %p362 = pneg %p131
        %p363 = pneg %p128
        %p364 = pneg %p152
        %p365 = pneg %p149
        %p366 = pneg %p173
        %p367 = pneg %p170
        %p368 = pneg %p199
        %p369 = pneg %p196
        %s370 = sand.u32 %s186, 1
        %s371 = scalar_lea.sflag [#allocation6], %s370
        %s372 = sand.u32 %s186, 1
        %s373 = smul.addr %s372, 64
        %s374 = scalar_lea.vmem [#allocation12], %s373
        %s375 = smul.u32 8, %s32
        %s376 = smul.u32 64, %s35
        %s377 = smul.u32 4, %s34
        %s378 = smul.u32 64, %s34
        %s379 = smul.u32 8, %s32
        %s380 = smul.u32 %s35, 512
        %s381 = sshra.s32 %s380, 7
        %s382 = sand.u32 %s380, 127
        %s383 = smul.addr %s381, 4
        %s384 = scalar_lea.vmem %s316, %s383 [#allocation4]
        %v385 = vld [vmem:[%s384] sm:$0xff]
        %v386 = vld [vmem:[%s384 + $0x8] sm:$0xff]
        %v387 = vld [vmem:[%s384 + $0x10] sm:$0xff]
        %v388 = vld [vmem:[%s384 + $0x18] sm:$0xff]
        %v389 = vld [vmem:[%s384 + $0x20] sm:$0xff]
        %v390 = vld [vmem:[%s384 + $0x28] sm:$0xff]
        %v391 = vld [vmem:[%s384 + $0x30] sm:$0xff]
        %v392 = vld [vmem:[%s384 + $0x38] sm:$0xff]
        %v393 = vld [vmem:[%s384 + $0x40] sm:$0xff]
        %v394 = vld [vmem:[%s384 + $0x48] sm:$0xff]
        %v395 = vld [vmem:[%s384 + $0x50] sm:$0xff]
        %v396 = vld [vmem:[%s384 + $0x58] sm:$0xff]
        %v397 = vld [vmem:[%s384 + $0x60] sm:$0xff]
        %v398 = vld [vmem:[%s384 + $0x68] sm:$0xff]
        %v399 = vld [vmem:[%s384 + $0x70] sm:$0xff]
        %v400 = vld [vmem:[%s384 + $0x78] sm:$0xff]
        %v401 = vld [vmem:[%s325] sm:$0xff]
        %v402 = vld [vmem:[%s325 + $0x8] sm:$0xff]
        %v403 = vld [vmem:[%s325 + $0x10] sm:$0xff]
        %v404 = vld [vmem:[%s325 + $0x18] sm:$0xff]
        %v405 = vld [vmem:[%s325 + $0x20] sm:$0xff]
        %v406 = vld [vmem:[%s325 + $0x28] sm:$0xff]
        %v407 = vld [vmem:[%s325 + $0x30] sm:$0xff]
        %v408 = vld [vmem:[%s325 + $0x38] sm:$0xff]
        %v409 = vld [vmem:[%s325 + $0x40] sm:$0xff]
        %v410 = vld [vmem:[%s325 + $0x48] sm:$0xff]
        %v411 = vld [vmem:[%s325 + $0x50] sm:$0xff]
        %v412 = vld [vmem:[%s325 + $0x58] sm:$0xff]
        %v413 = vld [vmem:[%s325 + $0x60] sm:$0xff]
        %v414 = vld [vmem:[%s325 + $0x68] sm:$0xff]
        %v415 = vld [vmem:[%s325 + $0x70] sm:$0xff]
        %v416 = vld [vmem:[%s325 + $0x78] sm:$0xff]
        %v417 = vld [vmem:[%s325 + $0x80] sm:$0xff]
        %v418 = vld [vmem:[%s325 + $0x88] sm:$0xff]
        %v419 = vld [vmem:[%s325 + $0x90] sm:$0xff]
        %v420 = vld [vmem:[%s325 + $0x98] sm:$0xff]
        %v421 = vld [vmem:[%s325 + $0xa0] sm:$0xff]
        %v422 = vld [vmem:[%s325 + $0xa8] sm:$0xff]
        %v423 = vld [vmem:[%s325 + $0xb0] sm:$0xff]
        %v424 = vld [vmem:[%s325 + $0xb8] sm:$0xff]
        %v425 = vld [vmem:[%s325 + $0xc0] sm:$0xff]
        %v426 = vld [vmem:[%s325 + $0xc8] sm:$0xff]
        %v427 = vld [vmem:[%s325 + $0xd0] sm:$0xff]
        %v428 = vld [vmem:[%s325 + $0xd8] sm:$0xff]
        %v429 = vld [vmem:[%s325 + $0xe0] sm:$0xff]
        %v430 = vld [vmem:[%s325 + $0xe8] sm:$0xff]
        %v431 = vld [vmem:[%s325 + $0xf0] sm:$0xff]
        %v432 = vld [vmem:[%s325 + $0xf8] sm:$0xff]
        %v433 = vld [vmem:[%s325 + $0x100] sm:$0xff]
        %v434 = vld [vmem:[%s325 + $0x108] sm:$0xff]
        %v435 = vld [vmem:[%s325 + $0x110] sm:$0xff]
        %v436 = vld [vmem:[%s325 + $0x118] sm:$0xff]
        %v437 = vld [vmem:[%s325 + $0x120] sm:$0xff]
        %v438 = vld [vmem:[%s325 + $0x128] sm:$0xff]
        %v439 = vld [vmem:[%s325 + $0x130] sm:$0xff]
        %v440 = vld [vmem:[%s325 + $0x138] sm:$0xff]
        %v441 = vld [vmem:[%s325 + $0x140] sm:$0xff]
        %v442 = vld [vmem:[%s325 + $0x148] sm:$0xff]
        %v443 = vld [vmem:[%s325 + $0x150] sm:$0xff]
        %v444 = vld [vmem:[%s325 + $0x158] sm:$0xff]
        %v445 = vld [vmem:[%s325 + $0x160] sm:$0xff]
        %v446 = vld [vmem:[%s325 + $0x168] sm:$0xff]
        %v447 = vld [vmem:[%s325 + $0x170] sm:$0xff]
        %v448 = vld [vmem:[%s325 + $0x178] sm:$0xff]
        %v449 = vld [vmem:[%s325 + $0x180] sm:$0xff]
        %v450 = vld [vmem:[%s325 + $0x188] sm:$0xff]
        %v451 = vld [vmem:[%s325 + $0x190] sm:$0xff]
        %v452 = vld [vmem:[%s325 + $0x198] sm:$0xff]
        %v453 = vld [vmem:[%s325 + $0x1a0] sm:$0xff]
        %v454 = vld [vmem:[%s325 + $0x1a8] sm:$0xff]
        %v455 = vld [vmem:[%s325 + $0x1b0] sm:$0xff]
        %v456 = vld [vmem:[%s325 + $0x1b8] sm:$0xff]
        %v457 = vld [vmem:[%s325 + $0x1c0] sm:$0xff]
        %v458 = vld [vmem:[%s325 + $0x1c8] sm:$0xff]
        %v459 = vld [vmem:[%s325 + $0x1d0] sm:$0xff]
        %v460 = vld [vmem:[%s325 + $0x1d8] sm:$0xff]
        %v461 = vld [vmem:[%s325 + $0x1e0] sm:$0xff]
        %v462 = vld [vmem:[%s325 + $0x1e8] sm:$0xff]
        %v463 = vld [vmem:[%s325 + $0x1f0] sm:$0xff]
        %v464 = vld [vmem:[%s325 + $0x1f8] sm:$0xff]
        %v465 = vld [vmem:[%s325 + $0x200] sm:$0xff]
        %v466 = vld [vmem:[%s325 + $0x208] sm:$0xff]
        %v467 = vld [vmem:[%s325 + $0x210] sm:$0xff]
        %v468 = vld [vmem:[%s325 + $0x218] sm:$0xff]
        %v469 = vld [vmem:[%s325 + $0x220] sm:$0xff]
        %v470 = vld [vmem:[%s325 + $0x228] sm:$0xff]
        %v471 = vld [vmem:[%s325 + $0x230] sm:$0xff]
        %v472 = vld [vmem:[%s325 + $0x238] sm:$0xff]
        %v473 = vld [vmem:[%s325 + $0x240] sm:$0xff]
        %v474 = vld [vmem:[%s325 + $0x248] sm:$0xff]
        %v475 = vld [vmem:[%s325 + $0x250] sm:$0xff]
        %v476 = vld [vmem:[%s325 + $0x258] sm:$0xff]
        %v477 = vld [vmem:[%s325 + $0x260] sm:$0xff]
        %v478 = vld [vmem:[%s325 + $0x268] sm:$0xff]
        %v479 = vld [vmem:[%s325 + $0x270] sm:$0xff]
        %v480 = vld [vmem:[%s325 + $0x278] sm:$0xff]
        %v481 = vld [vmem:[%s325 + $0x280] sm:$0xff]
        %v482 = vld [vmem:[%s325 + $0x288] sm:$0xff]
        %v483 = vld [vmem:[%s325 + $0x290] sm:$0xff]
        %v484 = vld [vmem:[%s325 + $0x298] sm:$0xff]
        %v485 = vld [vmem:[%s325 + $0x2a0] sm:$0xff]
        %v486 = vld [vmem:[%s325 + $0x2a8] sm:$0xff]
        %v487 = vld [vmem:[%s325 + $0x2b0] sm:$0xff]
        %v488 = vld [vmem:[%s325 + $0x2b8] sm:$0xff]
        %v489 = vld [vmem:[%s325 + $0x2c0] sm:$0xff]
        %v490 = vld [vmem:[%s325 + $0x2c8] sm:$0xff]
        %v491 = vld [vmem:[%s325 + $0x2d0] sm:$0xff]
        %v492 = vld [vmem:[%s325 + $0x2d8] sm:$0xff]
        %v493 = vld [vmem:[%s325 + $0x2e0] sm:$0xff]
        %v494 = vld [vmem:[%s325 + $0x2e8] sm:$0xff]
        %v495 = vld [vmem:[%s325 + $0x2f0] sm:$0xff]
        %v496 = vld [vmem:[%s325 + $0x2f8] sm:$0xff]
        %v497 = vld [vmem:[%s325 + $0x300] sm:$0xff]
        %v498 = vld [vmem:[%s325 + $0x308] sm:$0xff]
        %v499 = vld [vmem:[%s325 + $0x310] sm:$0xff]
        %v500 = vld [vmem:[%s325 + $0x318] sm:$0xff]
        %v501 = vld [vmem:[%s325 + $0x320] sm:$0xff]
        %v502 = vld [vmem:[%s325 + $0x328] sm:$0xff]
        %v503 = vld [vmem:[%s325 + $0x330] sm:$0xff]
        %v504 = vld [vmem:[%s325 + $0x338] sm:$0xff]
        %v505 = vld [vmem:[%s325 + $0x340] sm:$0xff]
        %v506 = vld [vmem:[%s325 + $0x348] sm:$0xff]
        %v507 = vld [vmem:[%s325 + $0x350] sm:$0xff]
        %v508 = vld [vmem:[%s325 + $0x358] sm:$0xff]
        %v509 = vld [vmem:[%s325 + $0x360] sm:$0xff]
        %v510 = vld [vmem:[%s325 + $0x368] sm:$0xff]
        %v511 = vld [vmem:[%s325 + $0x370] sm:$0xff]
        %v512 = vld [vmem:[%s325 + $0x378] sm:$0xff]
        %v513 = vld [vmem:[%s325 + $0x380] sm:$0xff]
        %v514 = vld [vmem:[%s325 + $0x388] sm:$0xff]
        %v515 = vld [vmem:[%s325 + $0x390] sm:$0xff]
        %v516 = vld [vmem:[%s325 + $0x398] sm:$0xff]
        %v517 = vld [vmem:[%s325 + $0x3a0] sm:$0xff]
        %v518 = vld [vmem:[%s325 + $0x3a8] sm:$0xff]
        %v519 = vld [vmem:[%s325 + $0x3b0] sm:$0xff]
        %v520 = vld [vmem:[%s325 + $0x3b8] sm:$0xff]
        %v521 = vld [vmem:[%s325 + $0x3c0] sm:$0xff]
        %v522 = vld [vmem:[%s325 + $0x3c8] sm:$0xff]
        %v523 = vld [vmem:[%s325 + $0x3d0] sm:$0xff]
        %v524 = vld [vmem:[%s325 + $0x3d8] sm:$0xff]
        %v525 = vld [vmem:[%s325 + $0x3e0] sm:$0xff]
        %v526 = vld [vmem:[%s325 + $0x3e8] sm:$0xff]
        %v527 = vld [vmem:[%s325 + $0x3f0] sm:$0xff]
        %v528 = vld [vmem:[%s325 + $0x3f8] sm:$0xff]
        %v545 = vunpack.c.l.b16 %v385
        %v546 = vunpack.c.h.b16 %v385
        %v547 = vunpack.c.l.b16 %v386
        %v548 = vunpack.c.h.b16 %v386
        %v549 = vunpack.c.l.b16 %v387
        %v550 = vunpack.c.h.b16 %v387
        %v551 = vunpack.c.l.b16 %v388
        %v552 = vunpack.c.h.b16 %v388
        %v553 = vunpack.c.l.b16 %v389
        %v554 = vunpack.c.h.b16 %v389
        %v555 = vunpack.c.l.b16 %v390
        %v556 = vunpack.c.h.b16 %v390
        %v557 = vunpack.c.l.b16 %v391
        %v558 = vunpack.c.h.b16 %v391
        %v559 = vunpack.c.l.b16 %v392
        %v560 = vunpack.c.h.b16 %v392
        %v561 = vunpack.c.l.b16 %v393
        %v562 = vunpack.c.h.b16 %v393
        %v563 = vunpack.c.l.b16 %v394
        %v564 = vunpack.c.h.b16 %v394
        %v565 = vunpack.c.l.b16 %v395
        %v566 = vunpack.c.h.b16 %v395
        %v567 = vunpack.c.l.b16 %v396
        %v568 = vunpack.c.h.b16 %v396
        %v569 = vunpack.c.l.b16 %v397
        %v570 = vunpack.c.h.b16 %v397
        %v571 = vunpack.c.l.b16 %v398
        %v572 = vunpack.c.h.b16 %v398
        %v573 = vunpack.c.l.b16 %v399
        %v574 = vunpack.c.h.b16 %v399
        %v575 = vunpack.c.l.b16 %v400
        %v576 = vunpack.c.h.b16 %v400
        %v577 = vpack.c.b16 %v549, %v545
        %v578 = vpack.c.b16 %v550, %v546
        %v579 = vpack.c.b16 %v551, %v547
        %v580 = vpack.c.b16 %v552, %v548
        %v581 = vpack.c.b16 %v557, %v553
        %v582 = vpack.c.b16 %v558, %v554
        %v583 = vpack.c.b16 %v559, %v555
        %v584 = vpack.c.b16 %v560, %v556
        %v585 = vpack.c.b16 %v565, %v561
        %v586 = vpack.c.b16 %v566, %v562
        %v587 = vpack.c.b16 %v567, %v563
        %v588 = vpack.c.b16 %v568, %v564
        %v589 = vpack.c.b16 %v573, %v569
        %v590 = vpack.c.b16 %v574, %v570
        %v591 = vpack.c.b16 %v575, %v571
        %v592 = vpack.c.b16 %v576, %v572
        %v737 = vunpack.c.l.b16 %v401
        %v738 = vunpack.c.h.b16 %v401
        %v739 = vunpack.c.l.b16 %v402
        %v740 = vunpack.c.h.b16 %v402
        %v741 = vunpack.c.l.b16 %v403
        %v742 = vunpack.c.h.b16 %v403
        %v743 = vunpack.c.l.b16 %v404
        %v744 = vunpack.c.h.b16 %v404
        %v745 = vunpack.c.l.b16 %v405
        %v746 = vunpack.c.h.b16 %v405
        %v747 = vunpack.c.l.b16 %v406
        %v748 = vunpack.c.h.b16 %v406
        %v749 = vunpack.c.l.b16 %v407
        %v750 = vunpack.c.h.b16 %v407
        %v751 = vunpack.c.l.b16 %v408
        %v752 = vunpack.c.h.b16 %v408
        %v753 = vunpack.c.l.b16 %v409
        %v754 = vunpack.c.h.b16 %v409
        %v755 = vunpack.c.l.b16 %v410
        %v756 = vunpack.c.h.b16 %v410
        %v757 = vunpack.c.l.b16 %v411
        %v758 = vunpack.c.h.b16 %v411
        %v759 = vunpack.c.l.b16 %v412
        %v760 = vunpack.c.h.b16 %v412
        %v761 = vunpack.c.l.b16 %v413
        %v762 = vunpack.c.h.b16 %v413
        %v763 = vunpack.c.l.b16 %v414
        %v764 = vunpack.c.h.b16 %v414
        %v765 = vunpack.c.l.b16 %v415
        %v766 = vunpack.c.h.b16 %v415
        %v767 = vunpack.c.l.b16 %v416
        %v768 = vunpack.c.h.b16 %v416
        %v769 = vunpack.c.l.b16 %v417
        %v770 = vunpack.c.h.b16 %v417
        %v771 = vunpack.c.l.b16 %v418
        %v772 = vunpack.c.h.b16 %v418
        %v773 = vunpack.c.l.b16 %v419
        %v774 = vunpack.c.h.b16 %v419
        %v775 = vunpack.c.l.b16 %v420
        %v776 = vunpack.c.h.b16 %v420
        %v777 = vunpack.c.l.b16 %v421
        %v778 = vunpack.c.h.b16 %v421
        %v779 = vunpack.c.l.b16 %v422
        %v780 = vunpack.c.h.b16 %v422
        %v781 = vunpack.c.l.b16 %v423
        %v782 = vunpack.c.h.b16 %v423
        %v783 = vunpack.c.l.b16 %v424
        %v784 = vunpack.c.h.b16 %v424
        %v785 = vunpack.c.l.b16 %v425
        %v786 = vunpack.c.h.b16 %v425
        %v787 = vunpack.c.l.b16 %v426
        %v788 = vunpack.c.h.b16 %v426
        %v789 = vunpack.c.l.b16 %v427
        %v790 = vunpack.c.h.b16 %v427
        %v791 = vunpack.c.l.b16 %v428
        %v792 = vunpack.c.h.b16 %v428
        %v793 = vunpack.c.l.b16 %v429
        %v794 = vunpack.c.h.b16 %v429
        %v795 = vunpack.c.l.b16 %v430
        %v796 = vunpack.c.h.b16 %v430
        %v797 = vunpack.c.l.b16 %v431
        %v798 = vunpack.c.h.b16 %v431
        %v799 = vunpack.c.l.b16 %v432
        %v800 = vunpack.c.h.b16 %v432
        %v801 = vunpack.c.l.b16 %v433
        %v802 = vunpack.c.h.b16 %v433
        %v803 = vunpack.c.l.b16 %v434
        %v804 = vunpack.c.h.b16 %v434
        %v805 = vunpack.c.l.b16 %v435
        %v806 = vunpack.c.h.b16 %v435
        %v807 = vunpack.c.l.b16 %v436
        %v808 = vunpack.c.h.b16 %v436
        %v809 = vunpack.c.l.b16 %v437
        %v810 = vunpack.c.h.b16 %v437
        %v811 = vunpack.c.l.b16 %v438
        %v812 = vunpack.c.h.b16 %v438
        %v813 = vunpack.c.l.b16 %v439
        %v814 = vunpack.c.h.b16 %v439
        %v815 = vunpack.c.l.b16 %v440
        %v816 = vunpack.c.h.b16 %v440
        %v817 = vunpack.c.l.b16 %v441
        %v818 = vunpack.c.h.b16 %v441
        %v819 = vunpack.c.l.b16 %v442
        %v820 = vunpack.c.h.b16 %v442
        %v821 = vunpack.c.l.b16 %v443
        %v822 = vunpack.c.h.b16 %v443
        %v823 = vunpack.c.l.b16 %v444
        %v824 = vunpack.c.h.b16 %v444
        %v825 = vunpack.c.l.b16 %v445
        %v826 = vunpack.c.h.b16 %v445
        %v827 = vunpack.c.l.b16 %v446
        %v828 = vunpack.c.h.b16 %v446
        %v829 = vunpack.c.l.b16 %v447
        %v830 = vunpack.c.h.b16 %v447
        %v831 = vunpack.c.l.b16 %v448
        %v832 = vunpack.c.h.b16 %v448
        %v833 = vunpack.c.l.b16 %v449
        %v834 = vunpack.c.h.b16 %v449
        %v835 = vunpack.c.l.b16 %v450
        %v836 = vunpack.c.h.b16 %v450
        %v837 = vunpack.c.l.b16 %v451
        %v838 = vunpack.c.h.b16 %v451
        %v839 = vunpack.c.l.b16 %v452
        %v840 = vunpack.c.h.b16 %v452
        %v841 = vunpack.c.l.b16 %v453
        %v842 = vunpack.c.h.b16 %v453
        %v843 = vunpack.c.l.b16 %v454
        %v844 = vunpack.c.h.b16 %v454
        %v845 = vunpack.c.l.b16 %v455
        %v846 = vunpack.c.h.b16 %v455
        %v847 = vunpack.c.l.b16 %v456
        %v848 = vunpack.c.h.b16 %v456
        %v849 = vunpack.c.l.b16 %v457
        %v850 = vunpack.c.h.b16 %v457
        %v851 = vunpack.c.l.b16 %v458
        %v852 = vunpack.c.h.b16 %v458
        %v853 = vunpack.c.l.b16 %v459
        %v854 = vunpack.c.h.b16 %v459
        %v855 = vunpack.c.l.b16 %v460
        %v856 = vunpack.c.h.b16 %v460
        %v857 = vunpack.c.l.b16 %v461
        %v858 = vunpack.c.h.b16 %v461
        %v859 = vunpack.c.l.b16 %v462
        %v860 = vunpack.c.h.b16 %v462
        %v861 = vunpack.c.l.b16 %v463
        %v862 = vunpack.c.h.b16 %v463
        %v863 = vunpack.c.l.b16 %v464
        %v864 = vunpack.c.h.b16 %v464
        %v865 = vunpack.c.l.b16 %v465
        %v866 = vunpack.c.h.b16 %v465
        %v867 = vunpack.c.l.b16 %v466
        %v868 = vunpack.c.h.b16 %v466
        %v869 = vunpack.c.l.b16 %v467
        %v870 = vunpack.c.h.b16 %v467
        %v871 = vunpack.c.l.b16 %v468
        %v872 = vunpack.c.h.b16 %v468
        %v873 = vunpack.c.l.b16 %v469
        %v874 = vunpack.c.h.b16 %v469
        %v875 = vunpack.c.l.b16 %v470
        %v876 = vunpack.c.h.b16 %v470
        %v877 = vunpack.c.l.b16 %v471
        %v878 = vunpack.c.h.b16 %v471
        %v879 = vunpack.c.l.b16 %v472
        %v880 = vunpack.c.h.b16 %v472
        %v881 = vunpack.c.l.b16 %v473
        %v882 = vunpack.c.h.b16 %v473
        %v883 = vunpack.c.l.b16 %v474
        %v884 = vunpack.c.h.b16 %v474
        %v885 = vunpack.c.l.b16 %v475
        %v886 = vunpack.c.h.b16 %v475
        %v887 = vunpack.c.l.b16 %v476
        %v888 = vunpack.c.h.b16 %v476
        %v889 = vunpack.c.l.b16 %v477
        %v890 = vunpack.c.h.b16 %v477
        %v891 = vunpack.c.l.b16 %v478
        %v892 = vunpack.c.h.b16 %v478
        %v893 = vunpack.c.l.b16 %v479
        %v894 = vunpack.c.h.b16 %v479
        %v895 = vunpack.c.l.b16 %v480
        %v896 = vunpack.c.h.b16 %v480
        %v897 = vunpack.c.l.b16 %v481
        %v898 = vunpack.c.h.b16 %v481
        %v899 = vunpack.c.l.b16 %v482
        %v900 = vunpack.c.h.b16 %v482
        %v901 = vunpack.c.l.b16 %v483
        %v902 = vunpack.c.h.b16 %v483
        %v903 = vunpack.c.l.b16 %v484
        %v904 = vunpack.c.h.b16 %v484
        %v905 = vunpack.c.l.b16 %v485
        %v906 = vunpack.c.h.b16 %v485
        %v907 = vunpack.c.l.b16 %v486
        %v908 = vunpack.c.h.b16 %v486
        %v909 = vunpack.c.l.b16 %v487
        %v910 = vunpack.c.h.b16 %v487
        %v911 = vunpack.c.l.b16 %v488
        %v912 = vunpack.c.h.b16 %v488
        %v913 = vunpack.c.l.b16 %v489
        %v914 = vunpack.c.h.b16 %v489
        %v915 = vunpack.c.l.b16 %v490
        %v916 = vunpack.c.h.b16 %v490
        %v917 = vunpack.c.l.b16 %v491
        %v918 = vunpack.c.h.b16 %v491
        %v919 = vunpack.c.l.b16 %v492
        %v920 = vunpack.c.h.b16 %v492
        %v921 = vunpack.c.l.b16 %v493
        %v922 = vunpack.c.h.b16 %v493
        %v923 = vunpack.c.l.b16 %v494
        %v924 = vunpack.c.h.b16 %v494
        %v925 = vunpack.c.l.b16 %v495
        %v926 = vunpack.c.h.b16 %v495
        %v927 = vunpack.c.l.b16 %v496
        %v928 = vunpack.c.h.b16 %v496
        %v929 = vunpack.c.l.b16 %v497
        %v930 = vunpack.c.h.b16 %v497
        %v931 = vunpack.c.l.b16 %v498
        %v932 = vunpack.c.h.b16 %v498
        %v933 = vunpack.c.l.b16 %v499
        %v934 = vunpack.c.h.b16 %v499
        %v935 = vunpack.c.l.b16 %v500
        %v936 = vunpack.c.h.b16 %v500
        %v937 = vunpack.c.l.b16 %v501
        %v938 = vunpack.c.h.b16 %v501
        %v939 = vunpack.c.l.b16 %v502
        %v940 = vunpack.c.h.b16 %v502
        %v941 = vunpack.c.l.b16 %v503
        %v942 = vunpack.c.h.b16 %v503
        %v943 = vunpack.c.l.b16 %v504
        %v944 = vunpack.c.h.b16 %v504
        %v945 = vunpack.c.l.b16 %v505
        %v946 = vunpack.c.h.b16 %v505
        %v947 = vunpack.c.l.b16 %v506
        %v948 = vunpack.c.h.b16 %v506
        %v949 = vunpack.c.l.b16 %v507
        %v950 = vunpack.c.h.b16 %v507
        %v951 = vunpack.c.l.b16 %v508
        %v952 = vunpack.c.h.b16 %v508
        %v953 = vunpack.c.l.b16 %v509
        %v954 = vunpack.c.h.b16 %v509
        %v955 = vunpack.c.l.b16 %v510
        %v956 = vunpack.c.h.b16 %v510
        %v957 = vunpack.c.l.b16 %v511
        %v958 = vunpack.c.h.b16 %v511
        %v959 = vunpack.c.l.b16 %v512
        %v960 = vunpack.c.h.b16 %v512
        %v961 = vunpack.c.l.b16 %v513
        %v962 = vunpack.c.h.b16 %v513
        %v963 = vunpack.c.l.b16 %v514
        %v964 = vunpack.c.h.b16 %v514
        %v965 = vunpack.c.l.b16 %v515
        %v966 = vunpack.c.h.b16 %v515
        %v967 = vunpack.c.l.b16 %v516
        %v968 = vunpack.c.h.b16 %v516
        %v969 = vunpack.c.l.b16 %v517
        %v970 = vunpack.c.h.b16 %v517
        %v971 = vunpack.c.l.b16 %v518
        %v972 = vunpack.c.h.b16 %v518
        %v973 = vunpack.c.l.b16 %v519
        %v974 = vunpack.c.h.b16 %v519
        %v975 = vunpack.c.l.b16 %v520
        %v976 = vunpack.c.h.b16 %v520
        %v977 = vunpack.c.l.b16 %v521
        %v978 = vunpack.c.h.b16 %v521
        %v979 = vunpack.c.l.b16 %v522
        %v980 = vunpack.c.h.b16 %v522
        %v981 = vunpack.c.l.b16 %v523
        %v982 = vunpack.c.h.b16 %v523
        %v983 = vunpack.c.l.b16 %v524
        %v984 = vunpack.c.h.b16 %v524
        %v985 = vunpack.c.l.b16 %v525
        %v986 = vunpack.c.h.b16 %v525
        %v987 = vunpack.c.l.b16 %v526
        %v988 = vunpack.c.h.b16 %v526
        %v989 = vunpack.c.l.b16 %v527
        %v990 = vunpack.c.h.b16 %v527
        %v991 = vunpack.c.l.b16 %v528
        %v992 = vunpack.c.h.b16 %v528
        %v993 = vpack.c.b16 %v741, %v737
        %v994 = vpack.c.b16 %v742, %v738
        %v995 = vpack.c.b16 %v743, %v739
        %v996 = vpack.c.b16 %v744, %v740
        %v997 = vpack.c.b16 %v749, %v745
        %v998 = vpack.c.b16 %v750, %v746
        %v999 = vpack.c.b16 %v751, %v747
        %v1000 = vpack.c.b16 %v752, %v748
        %v1001 = vpack.c.b16 %v757, %v753
        %v1002 = vpack.c.b16 %v758, %v754
        %v1003 = vpack.c.b16 %v759, %v755
        %v1004 = vpack.c.b16 %v760, %v756
        %v1005 = vpack.c.b16 %v765, %v761
        %v1006 = vpack.c.b16 %v766, %v762
        %v1007 = vpack.c.b16 %v767, %v763
        %v1008 = vpack.c.b16 %v768, %v764
        %v1009 = vpack.c.b16 %v773, %v769
        %v1010 = vpack.c.b16 %v774, %v770
        %v1011 = vpack.c.b16 %v775, %v771
        %v1012 = vpack.c.b16 %v776, %v772
        %v1013 = vpack.c.b16 %v781, %v777
        %v1014 = vpack.c.b16 %v782, %v778
        %v1015 = vpack.c.b16 %v783, %v779
        %v1016 = vpack.c.b16 %v784, %v780
        %v1017 = vpack.c.b16 %v789, %v785
        %v1018 = vpack.c.b16 %v790, %v786
        %v1019 = vpack.c.b16 %v791, %v787
        %v1020 = vpack.c.b16 %v792, %v788
        %v1021 = vpack.c.b16 %v797, %v793
        %v1022 = vpack.c.b16 %v798, %v794
        %v1023 = vpack.c.b16 %v799, %v795
        %v1024 = vpack.c.b16 %v800, %v796
        %v1025 = vpack.c.b16 %v805, %v801
        %v1026 = vpack.c.b16 %v806, %v802
        %v1027 = vpack.c.b16 %v807, %v803
        %v1028 = vpack.c.b16 %v808, %v804
        %v1029 = vpack.c.b16 %v813, %v809
        %v1030 = vpack.c.b16 %v814, %v810
        %v1031 = vpack.c.b16 %v815, %v811
        %v1032 = vpack.c.b16 %v816, %v812
        %v1033 = vpack.c.b16 %v821, %v817
        %v1034 = vpack.c.b16 %v822, %v818
        %v1035 = vpack.c.b16 %v823, %v819
        %v1036 = vpack.c.b16 %v824, %v820
        %v1037 = vpack.c.b16 %v829, %v825
        %v1038 = vpack.c.b16 %v830, %v826
        %v1039 = vpack.c.b16 %v831, %v827
        %v1040 = vpack.c.b16 %v832, %v828
        %v1041 = vpack.c.b16 %v837, %v833
        %v1042 = vpack.c.b16 %v838, %v834
        %v1043 = vpack.c.b16 %v839, %v835
        %v1044 = vpack.c.b16 %v840, %v836
        %v1045 = vpack.c.b16 %v845, %v841
        %v1046 = vpack.c.b16 %v846, %v842
        %v1047 = vpack.c.b16 %v847, %v843
        %v1048 = vpack.c.b16 %v848, %v844
        %v1049 = vpack.c.b16 %v853, %v849
        %v1050 = vpack.c.b16 %v854, %v850
        %v1051 = vpack.c.b16 %v855, %v851
        %v1052 = vpack.c.b16 %v856, %v852
        %v1053 = vpack.c.b16 %v861, %v857
        %v1054 = vpack.c.b16 %v862, %v858
        %v1055 = vpack.c.b16 %v863, %v859
        %v1056 = vpack.c.b16 %v864, %v860
        %v1057 = vpack.c.b16 %v869, %v865
        %v1058 = vpack.c.b16 %v870, %v866
        %v1059 = vpack.c.b16 %v871, %v867
        %v1060 = vpack.c.b16 %v872, %v868
        %v1061 = vpack.c.b16 %v877, %v873
        %v1062 = vpack.c.b16 %v878, %v874
        %v1063 = vpack.c.b16 %v879, %v875
        %v1064 = vpack.c.b16 %v880, %v876
        %v1065 = vpack.c.b16 %v885, %v881
        %v1066 = vpack.c.b16 %v886, %v882
        %v1067 = vpack.c.b16 %v887, %v883
        %v1068 = vpack.c.b16 %v888, %v884
        %v1069 = vpack.c.b16 %v893, %v889
        %v1070 = vpack.c.b16 %v894, %v890
        %v1071 = vpack.c.b16 %v895, %v891
        %v1072 = vpack.c.b16 %v896, %v892
        %v1073 = vpack.c.b16 %v901, %v897
        %v1074 = vpack.c.b16 %v902, %v898
        %v1075 = vpack.c.b16 %v903, %v899
        %v1076 = vpack.c.b16 %v904, %v900
        %v1077 = vpack.c.b16 %v909, %v905
        %v1078 = vpack.c.b16 %v910, %v906
        %v1079 = vpack.c.b16 %v911, %v907
        %v1080 = vpack.c.b16 %v912, %v908
        %v1081 = vpack.c.b16 %v917, %v913
        %v1082 = vpack.c.b16 %v918, %v914
        %v1083 = vpack.c.b16 %v919, %v915
        %v1084 = vpack.c.b16 %v920, %v916
        %v1085 = vpack.c.b16 %v925, %v921
        %v1086 = vpack.c.b16 %v926, %v922
        %v1087 = vpack.c.b16 %v927, %v923
        %v1088 = vpack.c.b16 %v928, %v924
        %v1089 = vpack.c.b16 %v933, %v929
        %v1090 = vpack.c.b16 %v934, %v930
        %v1091 = vpack.c.b16 %v935, %v931
        %v1092 = vpack.c.b16 %v936, %v932
        %v1093 = vpack.c.b16 %v941, %v937
        %v1094 = vpack.c.b16 %v942, %v938
        %v1095 = vpack.c.b16 %v943, %v939
        %v1096 = vpack.c.b16 %v944, %v940
        %v1097 = vpack.c.b16 %v949, %v945
        %v1098 = vpack.c.b16 %v950, %v946
        %v1099 = vpack.c.b16 %v951, %v947
        %v1100 = vpack.c.b16 %v952, %v948
        %v1101 = vpack.c.b16 %v957, %v953
        %v1102 = vpack.c.b16 %v958, %v954
        %v1103 = vpack.c.b16 %v959, %v955
        %v1104 = vpack.c.b16 %v960, %v956
        %v1105 = vpack.c.b16 %v965, %v961
        %v1106 = vpack.c.b16 %v966, %v962
        %v1107 = vpack.c.b16 %v967, %v963
        %v1108 = vpack.c.b16 %v968, %v964
        %v1109 = vpack.c.b16 %v973, %v969
        %v1110 = vpack.c.b16 %v974, %v970
        %v1111 = vpack.c.b16 %v975, %v971
        %v1112 = vpack.c.b16 %v976, %v972
        %v1113 = vpack.c.b16 %v981, %v977
        %v1114 = vpack.c.b16 %v982, %v978
        %v1115 = vpack.c.b16 %v983, %v979
        %v1116 = vpack.c.b16 %v984, %v980
        %v1117 = vpack.c.b16 %v989, %v985
        %v1118 = vpack.c.b16 %v990, %v986
        %v1119 = vpack.c.b16 %v991, %v987
        %v1120 = vpack.c.b16 %v992, %v988
        %1249 = vmatprep.subr.bf16.mxu0 %v994
        %1250 = vmatpush1.bf16.msra.mxu0 %v993
        %1251 = vmatprep.subr.bf16.mxu0 %v998
        %1252 = vmatpush1.bf16.msra.mxu0 %v997
        %1253 = vmatprep.subr.bf16.mxu0 %v1002
        %1254 = vmatpush1.bf16.msra.mxu0 %v1001
        %1255 = vmatprep.subr.bf16.mxu0 %v1006
        %1256 = vmatpush1.bf16.msra.mxu0 %v1005
        %1257 = vmatprep.subr.bf16.mxu0 %v1010
        %1258 = vmatpush1.bf16.msra.mxu0 %v1009
        %1259 = vmatprep.subr.bf16.mxu0 %v1014
        %1260 = vmatpush1.bf16.msra.mxu0 %v1013
        %1261 = vmatprep.subr.bf16.mxu0 %v1018
        %1262 = vmatpush1.bf16.msra.mxu0 %v1017
        %1263 = vmatprep.subr.bf16.mxu0 %v1022
        %1264 = vmatpush1.bf16.msra.mxu0 %v1021
        %1265 = vmatprep.subr.bf16.mxu0 %v1026
        %1266 = vmatpush1.bf16.msra.mxu0 %v1025
        %1267 = vmatprep.subr.bf16.mxu0 %v1030
        %1268 = vmatpush1.bf16.msra.mxu0 %v1029
        %1269 = vmatprep.subr.bf16.mxu0 %v1034
        %1270 = vmatpush1.bf16.msra.mxu0 %v1033
        %1271 = vmatprep.subr.bf16.mxu0 %v1038
        %1272 = vmatpush1.bf16.msra.mxu0 %v1037
        %1273 = vmatprep.subr.bf16.mxu0 %v1042
        %1274 = vmatpush1.bf16.msra.mxu0 %v1041
        %1275 = vmatprep.subr.bf16.mxu0 %v1046
        %1276 = vmatpush1.bf16.msra.mxu0 %v1045
        %1277 = vmatprep.subr.bf16.mxu0 %v1050
        %1278 = vmatpush1.bf16.msra.mxu0 %v1049
        %1279 = vmatprep.subr.bf16.mxu0 %v1054
        %1280 = vmatpush1.bf16.msra.mxu0 %v1053
        %1281 = vmatprep.mubr.bf16.mxu0 %v578
        %1282 = vmatmul.mubr.bf16.gmra.mrb[0].mxu0 %v577
        %v1283 = vpop.f32.mrb[0].mxu0
        %v1284 = vadd.f32 0.0, %v1283
        %v1285 = vpop.f32.mrb[0].mxu0
        %v1286 = vadd.f32 0.0, %v1285
        %v1287 = vpop.f32.mrb[0].mxu0
        %v1288 = vadd.f32 0.0, %v1287
        %v1289 = vpop.f32.mrb[0].mxu0
        %v1290 = vadd.f32 0.0, %v1289
        %1291 = vmatprep.mubr.bf16.mxu0 %v582
        %1292 = vmatmul.mubr.bf16.gmra.mrb[0].mxu0 %v581
        %v1293 = vpop.f32.mrb[0].mxu0
        %v1294 = vadd.f32 0.0, %v1293
        %v1295 = vpop.f32.mrb[0].mxu0
        %v1296 = vadd.f32 0.0, %v1295
        %v1297 = vpop.f32.mrb[0].mxu0
        %v1298 = vadd.f32 0.0, %v1297
        %v1299 = vpop.f32.mrb[0].mxu0
        %v1300 = vadd.f32 0.0, %v1299
        %1301 = vmatprep.mubr.bf16.mxu0 %v586
        %1302 = vmatmul.mubr.bf16.gmra.mrb[0].mxu0 %v585
        %v1303 = vpop.f32.mrb[0].mxu0
        %v1304 = vadd.f32 0.0, %v1303
        %v1305 = vpop.f32.mrb[0].mxu0
        %v1306 = vadd.f32 0.0, %v1305
        %v1307 = vpop.f32.mrb[0].mxu0
        %v1308 = vadd.f32 0.0, %v1307
        %v1309 = vpop.f32.mrb[0].mxu0
        %v1310 = vadd.f32 0.0, %v1309
        %1311 = vmatprep.mubr.bf16.mxu0 %v590
        %1312 = vmatmul.mubr.bf16.gmra.mrb[0].mxu0 %v589
        %v1313 = vpop.f32.mrb[0].mxu0
        %v1314 = vadd.f32 0.0, %v1313
        %v1315 = vpop.f32.mrb[0].mxu0
        %v1316 = vadd.f32 0.0, %v1315
        %v1317 = vpop.f32.mrb[0].mxu0
        %v1318 = vadd.f32 0.0, %v1317
        %v1319 = vpop.f32.mrb[0].mxu0
        %v1320 = vadd.f32 0.0, %v1319
        %1321 = vdwg.mxu0
        %1322 = vmatprep.subr.bf16.mxu0 %v1058
        %1323 = vmatpush1.bf16.msra.mxu0 %v1057
        %1324 = vmatprep.subr.bf16.mxu0 %v1062
        %1325 = vmatpush1.bf16.msra.mxu0 %v1061
        %1326 = vmatprep.subr.bf16.mxu0 %v1066
        %1327 = vmatpush1.bf16.msra.mxu0 %v1065
        %1328 = vmatprep.subr.bf16.mxu0 %v1070
        %1329 = vmatpush1.bf16.msra.mxu0 %v1069
        %1330 = vmatprep.subr.bf16.mxu0 %v1074
        %1331 = vmatpush1.bf16.msra.mxu0 %v1073
        %1332 = vmatprep.subr.bf16.mxu0 %v1078
        %1333 = vmatpush1.bf16.msra.mxu0 %v1077
        %1334 = vmatprep.subr.bf16.mxu0 %v1082
        %1335 = vmatpush1.bf16.msra.mxu0 %v1081
        %1336 = vmatprep.subr.bf16.mxu0 %v1086
        %1337 = vmatpush1.bf16.msra.mxu0 %v1085
        %1338 = vmatprep.subr.bf16.mxu0 %v1090
        %1339 = vmatpush1.bf16.msra.mxu0 %v1089
        %1340 = vmatprep.subr.bf16.mxu0 %v1094
        %1341 = vmatpush1.bf16.msra.mxu0 %v1093
        %1342 = vmatprep.subr.bf16.mxu0 %v1098
        %1343 = vmatpush1.bf16.msra.mxu0 %v1097
        %1344 = vmatprep.subr.bf16.mxu0 %v1102
        %1345 = vmatpush1.bf16.msra.mxu0 %v1101
        %1346 = vmatprep.subr.bf16.mxu0 %v1106
        %1347 = vmatpush1.bf16.msra.mxu0 %v1105
        %1348 = vmatprep.subr.bf16.mxu0 %v1110
        %1349 = vmatpush1.bf16.msra.mxu0 %v1109
        %1350 = vmatprep.subr.bf16.mxu0 %v1114
        %1351 = vmatpush1.bf16.msra.mxu0 %v1113
        %1352 = vmatprep.subr.bf16.mxu0 %v1118
        %1353 = vmatpush1.bf16.msra.mxu0 %v1117
        %1354 = vmatprep.mubr.bf16.mxu0 %v580
        %1355 = vmatmul.mubr.bf16.gmra.mrb[0].mxu0 %v579
        %v1356 = vpop.f32.mrb[0].mxu0
        %v1357 = vadd.f32 %v1284, %v1356
        %v1358 = vpop.f32.mrb[0].mxu0
        %v1359 = vadd.f32 %v1286, %v1358
        %v1360 = vpop.f32.mrb[0].mxu0
        %v1361 = vadd.f32 %v1288, %v1360
        %v1362 = vpop.f32.mrb[0].mxu0
        %v1363 = vadd.f32 %v1290, %v1362
        %1364 = vmatprep.mubr.bf16.mxu0 %v584
        %1365 = vmatmul.mubr.bf16.gmra.mrb[0].mxu0 %v583
        %v1366 = vpop.f32.mrb[0].mxu0
        %v1367 = vadd.f32 %v1294, %v1366
        %v1368 = vpop.f32.mrb[0].mxu0
        %v1369 = vadd.f32 %v1296, %v1368
        %v1370 = vpop.f32.mrb[0].mxu0
        %v1371 = vadd.f32 %v1298, %v1370
        %v1372 = vpop.f32.mrb[0].mxu0
        %v1373 = vadd.f32 %v1300, %v1372
        %1374 = vmatprep.mubr.bf16.mxu0 %v588
        %1375 = vmatmul.mubr.bf16.gmra.mrb[0].mxu0 %v587
        %v1376 = vpop.f32.mrb[0].mxu0
        %v1377 = vadd.f32 %v1304, %v1376
        %v1378 = vpop.f32.mrb[0].mxu0
        %v1379 = vadd.f32 %v1306, %v1378
        %v1380 = vpop.f32.mrb[0].mxu0
        %v1381 = vadd.f32 %v1308, %v1380
        %v1382 = vpop.f32.mrb[0].mxu0
        %v1383 = vadd.f32 %v1310, %v1382
        %1384 = vmatprep.mubr.bf16.mxu0 %v592
        %1385 = vmatmul.mubr.bf16.gmra.mrb[0].mxu0 %v591
        %v1386 = vpop.f32.mrb[0].mxu0
        %v1387 = vadd.f32 %v1314, %v1386
        %v1388 = vpop.f32.mrb[0].mxu0
        %v1389 = vadd.f32 %v1316, %v1388
        %v1390 = vpop.f32.mrb[0].mxu0
        %v1391 = vadd.f32 %v1318, %v1390
        %v1392 = vpop.f32.mrb[0].mxu0
        %v1393 = vadd.f32 %v1320, %v1392
        %1394 = vdwg.mxu0
        %1395 = vmatprep.subr.bf16.mxu0 %v996
        %1396 = vmatpush1.bf16.msra.mxu0 %v995
        %1397 = vmatprep.subr.bf16.mxu0 %v1000
        %1398 = vmatpush1.bf16.msra.mxu0 %v999
        %1399 = vmatprep.subr.bf16.mxu0 %v1004
        %1400 = vmatpush1.bf16.msra.mxu0 %v1003
        %1401 = vmatprep.subr.bf16.mxu0 %v1008
        %1402 = vmatpush1.bf16.msra.mxu0 %v1007
        %1403 = vmatprep.subr.bf16.mxu0 %v1012
        %1404 = vmatpush1.bf16.msra.mxu0 %v1011
        %1405 = vmatprep.subr.bf16.mxu0 %v1016
        %1406 = vmatpush1.bf16.msra.mxu0 %v1015
        %1407 = vmatprep.subr.bf16.mxu0 %v1020
        %1408 = vmatpush1.bf16.msra.mxu0 %v1019
        %1409 = vmatprep.subr.bf16.mxu0 %v1024
        %1410 = vmatpush1.bf16.msra.mxu0 %v1023
        %1411 = vmatprep.subr.bf16.mxu0 %v1028
        %1412 = vmatpush1.bf16.msra.mxu0 %v1027
        %1413 = vmatprep.subr.bf16.mxu0 %v1032
        %1414 = vmatpush1.bf16.msra.mxu0 %v1031
        %1415 = vmatprep.subr.bf16.mxu0 %v1036
        %1416 = vmatpush1.bf16.msra.mxu0 %v1035
        %1417 = vmatprep.subr.bf16.mxu0 %v1040
        %1418 = vmatpush1.bf16.msra.mxu0 %v1039
        %1419 = vmatprep.subr.bf16.mxu0 %v1044
        %1420 = vmatpush1.bf16.msra.mxu0 %v1043
        %1421 = vmatprep.subr.bf16.mxu0 %v1048
        %1422 = vmatpush1.bf16.msra.mxu0 %v1047
        %1423 = vmatprep.subr.bf16.mxu0 %v1052
        %1424 = vmatpush1.bf16.msra.mxu0 %v1051
        %1425 = vmatprep.subr.bf16.mxu0 %v1056
        %1426 = vmatpush1.bf16.msra.mxu0 %v1055
        %1427 = vmatprep.mubr.bf16.mxu0 %v578
        %1428 = vmatmul.mubr.bf16.gmra.mrb[0].mxu0 %v577
        %v1429 = vpop.f32.mrb[0].mxu0
        %v1430 = vadd.f32 0.0, %v1429
        %v1431 = vpop.f32.mrb[0].mxu0
        %v1432 = vadd.f32 0.0, %v1431
        %v1433 = vpop.f32.mrb[0].mxu0
        %v1434 = vadd.f32 0.0, %v1433
        %v1435 = vpop.f32.mrb[0].mxu0
        %v1436 = vadd.f32 0.0, %v1435
        %1437 = vmatprep.mubr.bf16.mxu0 %v582
        %1438 = vmatmul.mubr.bf16.gmra.mrb[0].mxu0 %v581
        %v1439 = vpop.f32.mrb[0].mxu0
        %v1440 = vadd.f32 0.0, %v1439
        %v1441 = vpop.f32.mrb[0].mxu0
        %v1442 = vadd.f32 0.0, %v1441
        %v1443 = vpop.f32.mrb[0].mxu0
        %v1444 = vadd.f32 0.0, %v1443
        %v1445 = vpop.f32.mrb[0].mxu0
        %v1446 = vadd.f32 0.0, %v1445
        %1447 = vmatprep.mubr.bf16.mxu0 %v586
        %1448 = vmatmul.mubr.bf16.gmra.mrb[0].mxu0 %v585
        %v1449 = vpop.f32.mrb[0].mxu0
        %v1450 = vadd.f32 0.0, %v1449
        %v1451 = vpop.f32.mrb[0].mxu0
        %v1452 = vadd.f32 0.0, %v1451
        %v1453 = vpop.f32.mrb[0].mxu0
        %v1454 = vadd.f32 0.0, %v1453
        %v1455 = vpop.f32.mrb[0].mxu0
        %v1456 = vadd.f32 0.0, %v1455
        %1457 = vmatprep.mubr.bf16.mxu0 %v590
        %1458 = vmatmul.mubr.bf16.gmra.mrb[0].mxu0 %v589
        %v1459 = vpop.f32.mrb[0].mxu0
        %v1460 = vadd.f32 0.0, %v1459
        %v1461 = vpop.f32.mrb[0].mxu0
        %v1462 = vadd.f32 0.0, %v1461
        %v1463 = vpop.f32.mrb[0].mxu0
        %v1464 = vadd.f32 0.0, %v1463
        %v1465 = vpop.f32.mrb[0].mxu0
        %v1466 = vadd.f32 0.0, %v1465
        %1467 = vdwg.mxu0
        %1468 = vmatprep.subr.bf16.mxu0 %v1060
        %1469 = vmatpush1.bf16.msra.mxu0 %v1059
        %1470 = vmatprep.subr.bf16.mxu0 %v1064
        %1471 = vmatpush1.bf16.msra.mxu0 %v1063
        %1472 = vmatprep.subr.bf16.mxu0 %v1068
        %1473 = vmatpush1.bf16.msra.mxu0 %v1067
        %1474 = vmatprep.subr.bf16.mxu0 %v1072
        %1475 = vmatpush1.bf16.msra.mxu0 %v1071
        %1476 = vmatprep.subr.bf16.mxu0 %v1076
        %1477 = vmatpush1.bf16.msra.mxu0 %v1075
        %1478 = vmatprep.subr.bf16.mxu0 %v1080
        %1479 = vmatpush1.bf16.msra.mxu0 %v1079
        %1480 = vmatprep.subr.bf16.mxu0 %v1084
        %1481 = vmatpush1.bf16.msra.mxu0 %v1083
        %1482 = vmatprep.subr.bf16.mxu0 %v1088
        %1483 = vmatpush1.bf16.msra.mxu0 %v1087
        %1484 = vmatprep.subr.bf16.mxu0 %v1092
        %1485 = vmatpush1.bf16.msra.mxu0 %v1091
        %1486 = vmatprep.subr.bf16.mxu0 %v1096
        %1487 = vmatpush1.bf16.msra.mxu0 %v1095
        %1488 = vmatprep.subr.bf16.mxu0 %v1100
        %1489 = vmatpush1.bf16.msra.mxu0 %v1099
        %1490 = vmatprep.subr.bf16.mxu0 %v1104
        %1491 = vmatpush1.bf16.msra.mxu0 %v1103
        %1492 = vmatprep.subr.bf16.mxu0 %v1108
        %1493 = vmatpush1.bf16.msra.mxu0 %v1107
        %1494 = vmatprep.subr.bf16.mxu0 %v1112
        %1495 = vmatpush1.bf16.msra.mxu0 %v1111
        %1496 = vmatprep.subr.bf16.mxu0 %v1116
        %1497 = vmatpush1.bf16.msra.mxu0 %v1115
        %1498 = vmatprep.subr.bf16.mxu0 %v1120
        %1499 = vmatpush1.bf16.msra.mxu0 %v1119
        %1500 = vmatprep.mubr.bf16.mxu0 %v580
        %1501 = vmatmul.mubr.bf16.gmra.mrb[0].mxu0 %v579
        %v1502 = vpop.f32.mrb[0].mxu0
        %v1503 = vadd.f32 %v1430, %v1502
        %v1504 = vpop.f32.mrb[0].mxu0
        %v1505 = vadd.f32 %v1432, %v1504
        %v1506 = vpop.f32.mrb[0].mxu0
        %v1507 = vadd.f32 %v1434, %v1506
        %v1508 = vpop.f32.mrb[0].mxu0
        %v1509 = vadd.f32 %v1436, %v1508
        %1510 = vmatprep.mubr.bf16.mxu0 %v584
        %1511 = vmatmul.mubr.bf16.gmra.mrb[0].mxu0 %v583
        %v1512 = vpop.f32.mrb[0].mxu0
        %v1513 = vadd.f32 %v1440, %v1512
        %v1514 = vpop.f32.mrb[0].mxu0
        %v1515 = vadd.f32 %v1442, %v1514
        %v1516 = vpop.f32.mrb[0].mxu0
        %v1517 = vadd.f32 %v1444, %v1516
        %v1518 = vpop.f32.mrb[0].mxu0
        %v1519 = vadd.f32 %v1446, %v1518
        %1520 = vmatprep.mubr.bf16.mxu0 %v588
        %1521 = vmatmul.mubr.bf16.gmra.mrb[0].mxu0 %v587
        %v1522 = vpop.f32.mrb[0].mxu0
        %v1523 = vadd.f32 %v1450, %v1522
        %v1524 = vpop.f32.mrb[0].mxu0
        %v1525 = vadd.f32 %v1452, %v1524
        %v1526 = vpop.f32.mrb[0].mxu0
        %v1527 = vadd.f32 %v1454, %v1526
        %v1528 = vpop.f32.mrb[0].mxu0
        %v1529 = vadd.f32 %v1456, %v1528
        %1530 = vmatprep.mubr.bf16.mxu0 %v592
        %1531 = vmatmul.mubr.bf16.gmra.mrb[0].mxu0 %v591
        %v1532 = vpop.f32.mrb[0].mxu0
        %v1533 = vadd.f32 %v1460, %v1532
        %v1534 = vpop.f32.mrb[0].mxu0
        %v1535 = vadd.f32 %v1462, %v1534
        %v1536 = vpop.f32.mrb[0].mxu0
        %v1537 = vadd.f32 %v1464, %v1536
        %v1538 = vpop.f32.mrb[0].mxu0
        %v1539 = vadd.f32 %v1466, %v1538
        %1540 = vdwg.mxu0
        %p1541 = scmp.eq.s32.totalorder %s35, 0
        // Predicated region
        $region57: #{tpu_custom_call.1} parent=39 // pred_check
          %p1542 = pneg %p1541
        $region58: #{tpu_custom_call.1} parent=39 // pred_check_branch
          %1544 = sbr.rel (%p1542) target = $region60
        $region59: #{tpu_custom_call.1} parent=39 // pred_region
          %1545 = vst [vmem:[#allocation2] sm:$0xff] %v1357
          %1546 = vst [vmem:[#allocation2 + $0x8] sm:$0xff] %v1359
          %1547 = vst [vmem:[#allocation2 + $0x10] sm:$0xff] %v1503
          %1548 = vst [vmem:[#allocation2 + $0x18] sm:$0xff] %v1505
          %1549 = vst [vmem:[#allocation2 + $0x20] sm:$0xff] %v1361
          %1550 = vst [vmem:[#allocation2 + $0x28] sm:$0xff] %v1363
          %1551 = vst [vmem:[#allocation2 + $0x30] sm:$0xff] %v1507
          %1552 = vst [vmem:[#allocation2 + $0x38] sm:$0xff] %v1509
          %1553 = vst [vmem:[#allocation2 + $0x40] sm:$0xff] %v1367
          %1554 = vst [vmem:[#allocation2 + $0x48] sm:$0xff] %v1369
          %1555 = vst [vmem:[#allocation2 + $0x50] sm:$0xff] %v1513
          %1556 = vst [vmem:[#allocation2 + $0x58] sm:$0xff] %v1515
          %1557 = vst [vmem:[#allocation2 + $0x60] sm:$0xff] %v1371
          %1558 = vst [vmem:[#allocation2 + $0x68] sm:$0xff] %v1373
          %1559 = vst [vmem:[#allocation2 + $0x70] sm:$0xff] %v1517
          %1560 = vst [vmem:[#allocation2 + $0x78] sm:$0xff] %v1519
          %1561 = vst [vmem:[#allocation2 + $0x80] sm:$0xff] %v1377
          %1562 = vst [vmem:[#allocation2 + $0x88] sm:$0xff] %v1379
          %1563 = vst [vmem:[#allocation2 + $0x90] sm:$0xff] %v1523
          %1564 = vst [vmem:[#allocation2 + $0x98] sm:$0xff] %v1525
          %1565 = vst [vmem:[#allocation2 + $0xa0] sm:$0xff] %v1381
          %1566 = vst [vmem:[#allocation2 + $0xa8] sm:$0xff] %v1383
          %1567 = vst [vmem:[#allocation2 + $0xb0] sm:$0xff] %v1527
          %1568 = vst [vmem:[#allocation2 + $0xb8] sm:$0xff] %v1529
          %1569 = vst [vmem:[#allocation2 + $0xc0] sm:$0xff] %v1387
          %1570 = vst [vmem:[#allocation2 + $0xc8] sm:$0xff] %v1389
          %1571 = vst [vmem:[#allocation2 + $0xd0] sm:$0xff] %v1533
          %1572 = vst [vmem:[#allocation2 + $0xd8] sm:$0xff] %v1535
          %1573 = vst [vmem:[#allocation2 + $0xe0] sm:$0xff] %v1391
          %1574 = vst [vmem:[#allocation2 + $0xe8] sm:$0xff] %v1393
          %1575 = vst [vmem:[#allocation2 + $0xf0] sm:$0xff] %v1537
          %1576 = vst [vmem:[#allocation2 + $0xf8] sm:$0xff] %v1539
        $region60: #{tpu_custom_call.1} parent=39 // pred_fallthru
          _
        %p1577 = scmp.gt.s32.totalorder %s35, 0
        // Predicated region
        $region61: #{tpu_custom_call.1} parent=39 // pred_check
          %p1578 = pneg %p1577
        $region62: #{tpu_custom_call.1} parent=39 // pred_check_branch
          %1580 = sbr.rel (%p1578) target = $region64
        $region63: #{tpu_custom_call.1} parent=39 // pred_region
          %v1581 = vld [vmem:[#allocation2] sm:$0xff]
          %v1582 = vld [vmem:[#allocation2 + $0x8] sm:$0xff]
          %v1583 = vld [vmem:[#allocation2 + $0x10] sm:$0xff]
          %v1584 = vld [vmem:[#allocation2 + $0x18] sm:$0xff]
          %v1585 = vld [vmem:[#allocation2 + $0x20] sm:$0xff]
          %v1586 = vld [vmem:[#allocation2 + $0x28] sm:$0xff]
          %v1587 = vld [vmem:[#allocation2 + $0x30] sm:$0xff]
          %v1588 = vld [vmem:[#allocation2 + $0x38] sm:$0xff]
          %v1589 = vld [vmem:[#allocation2 + $0x40] sm:$0xff]
          %v1590 = vld [vmem:[#allocation2 + $0x48] sm:$0xff]
          %v1591 = vld [vmem:[#allocation2 + $0x50] sm:$0xff]
          %v1592 = vld [vmem:[#allocation2 + $0x58] sm:$0xff]
          %v1593 = vld [vmem:[#allocation2 + $0x60] sm:$0xff]
          %v1594 = vld [vmem:[#allocation2 + $0x68] sm:$0xff]
          %v1595 = vld [vmem:[#allocation2 + $0x70] sm:$0xff]
          %v1596 = vld [vmem:[#allocation2 + $0x78] sm:$0xff]
          %v1597 = vld [vmem:[#allocation2 + $0x80] sm:$0xff]
          %v1598 = vld [vmem:[#allocation2 + $0x88] sm:$0xff]
          %v1599 = vld [vmem:[#allocation2 + $0x90] sm:$0xff]
          %v1600 = vld [vmem:[#allocation2 + $0x98] sm:$0xff]
          %v1601 = vld [vmem:[#allocation2 + $0xa0] sm:$0xff]
          %v1602 = vld [vmem:[#allocation2 + $0xa8] sm:$0xff]
          %v1603 = vld [vmem:[#allocation2 + $0xb0] sm:$0xff]
          %v1604 = vld [vmem:[#allocation2 + $0xb8] sm:$0xff]
          %v1605 = vld [vmem:[#allocation2 + $0xc0] sm:$0xff]
          %v1606 = vld [vmem:[#allocation2 + $0xc8] sm:$0xff]
          %v1607 = vld [vmem:[#allocation2 + $0xd0] sm:$0xff]
          %v1608 = vld [vmem:[#allocation2 + $0xd8] sm:$0xff]
          %v1609 = vld [vmem:[#allocation2 + $0xe0] sm:$0xff]
          %v1610 = vld [vmem:[#allocation2 + $0xe8] sm:$0xff]
          %v1611 = vld [vmem:[#allocation2 + $0xf0] sm:$0xff]
          %v1612 = vld [vmem:[#allocation2 + $0xf8] sm:$0xff]
          %v1613 = vadd.f32 %v1581, %v1357
          %v1614 = vadd.f32 %v1582, %v1359
          %v1615 = vadd.f32 %v1583, %v1503
          %v1616 = vadd.f32 %v1584, %v1505
          %v1617 = vadd.f32 %v1585, %v1361
          %v1618 = vadd.f32 %v1586, %v1363
          %v1619 = vadd.f32 %v1587, %v1507
          %v1620 = vadd.f32 %v1588, %v1509
          %v1621 = vadd.f32 %v1589, %v1367
          %v1622 = vadd.f32 %v1590, %v1369
          %v1623 = vadd.f32 %v1591, %v1513
          %v1624 = vadd.f32 %v1592, %v1515
          %v1625 = vadd.f32 %v1593, %v1371
          %v1626 = vadd.f32 %v1594, %v1373
          %v1627 = vadd.f32 %v1595, %v1517
          %v1628 = vadd.f32 %v1596, %v1519
          %v1629 = vadd.f32 %v1597, %v1377
          %v1630 = vadd.f32 %v1598, %v1379
          %v1631 = vadd.f32 %v1599, %v1523
          %v1632 = vadd.f32 %v1600, %v1525
          %v1633 = vadd.f32 %v1601, %v1381
          %v1634 = vadd.f32 %v1602, %v1383
          %v1635 = vadd.f32 %v1603, %v1527
          %v1636 = vadd.f32 %v1604, %v1529
          %v1637 = vadd.f32 %v1605, %v1387
          %v1638 = vadd.f32 %v1606, %v1389
          %v1639 = vadd.f32 %v1607, %v1533
          %v1640 = vadd.f32 %v1608, %v1535
          %v1641 = vadd.f32 %v1609, %v1391
          %v1642 = vadd.f32 %v1610, %v1393
          %v1643 = vadd.f32 %v1611, %v1537
          %v1644 = vadd.f32 %v1612, %v1539
          %1645 = vst [vmem:[#allocation2] sm:$0xff] %v1613
          %1646 = vst [vmem:[#allocation2 + $0x8] sm:$0xff] %v1614
          %1647 = vst [vmem:[#allocation2 + $0x10] sm:$0xff] %v1615
          %1648 = vst [vmem:[#allocation2 + $0x18] sm:$0xff] %v1616
          %1649 = vst [vmem:[#allocation2 + $0x20] sm:$0xff] %v1617
          %1650 = vst [vmem:[#allocation2 + $0x28] sm:$0xff] %v1618
          %1651 = vst [vmem:[#allocation2 + $0x30] sm:$0xff] %v1619
          %1652 = vst [vmem:[#allocation2 + $0x38] sm:$0xff] %v1620
          %1653 = vst [vmem:[#allocation2 + $0x40] sm:$0xff] %v1621
          %1654 = vst [vmem:[#allocation2 + $0x48] sm:$0xff] %v1622
          %1655 = vst [vmem:[#allocation2 + $0x50] sm:$0xff] %v1623
          %1656 = vst [vmem:[#allocation2 + $0x58] sm:$0xff] %v1624
          %1657 = vst [vmem:[#allocation2 + $0x60] sm:$0xff] %v1625
          %1658 = vst [vmem:[#allocation2 + $0x68] sm:$0xff] %v1626
          %1659 = vst [vmem:[#allocation2 + $0x70] sm:$0xff] %v1627
          %1660 = vst [vmem:[#allocation2 + $0x78] sm:$0xff] %v1628
          %1661 = vst [vmem:[#allocation2 + $0x80] sm:$0xff] %v1629
          %1662 = vst [vmem:[#allocation2 + $0x88] sm:$0xff] %v1630
          %1663 = vst [vmem:[#allocation2 + $0x90] sm:$0xff] %v1631
          %1664 = vst [vmem:[#allocation2 + $0x98] sm:$0xff] %v1632
          %1665 = vst [vmem:[#allocation2 + $0xa0] sm:$0xff] %v1633
          %1666 = vst [vmem:[#allocation2 + $0xa8] sm:$0xff] %v1634
          %1667 = vst [vmem:[#allocation2 + $0xb0] sm:$0xff] %v1635
          %1668 = vst [vmem:[#allocation2 + $0xb8] sm:$0xff] %v1636
          %1669 = vst [vmem:[#allocation2 + $0xc0] sm:$0xff] %v1637
          %1670 = vst [vmem:[#allocation2 + $0xc8] sm:$0xff] %v1638
          %1671 = vst [vmem:[#allocation2 + $0xd0] sm:$0xff] %v1639
          %1672 = vst [vmem:[#allocation2 + $0xd8] sm:$0xff] %v1640
          %1673 = vst [vmem:[#allocation2 + $0xe0] sm:$0xff] %v1641
          %1674 = vst [vmem:[#allocation2 + $0xe8] sm:$0xff] %v1642
          %1675 = vst [vmem:[#allocation2 + $0xf0] sm:$0xff] %v1643
          %1676 = vst [vmem:[#allocation2 + $0xf8] sm:$0xff] %v1644
        $region64: #{tpu_custom_call.1} parent=39 // pred_fallthru
          _
        // Predicated region
        $region65: #{tpu_custom_call.1} parent=39 // pred_check
          %p1677 = pneg %p1541
        $region66: #{tpu_custom_call.1} parent=39 // pred_check_branch
          %1679 = sbr.rel (%p1677) target = $region68
        $region67: #{tpu_custom_call.1} parent=39 // pred_region
          %v1680 = vld [vmem:[#allocation2] sm:$0xff]
          %v1681 = vld [vmem:[#allocation2 + $0x8] sm:$0xff]
          %v1682 = vld [vmem:[#allocation2 + $0x10] sm:$0xff]
          %v1683 = vld [vmem:[#allocation2 + $0x18] sm:$0xff]
          %v1684 = vld [vmem:[#allocation2 + $0x20] sm:$0xff]
          %v1685 = vld [vmem:[#allocation2 + $0x28] sm:$0xff]
          %v1686 = vld [vmem:[#allocation2 + $0x30] sm:$0xff]
          %v1687 = vld [vmem:[#allocation2 + $0x38] sm:$0xff]
          %v1688 = vld [vmem:[#allocation2 + $0x40] sm:$0xff]
          %v1689 = vld [vmem:[#allocation2 + $0x48] sm:$0xff]
          %v1690 = vld [vmem:[#allocation2 + $0x50] sm:$0xff]
          %v1691 = vld [vmem:[#allocation2 + $0x58] sm:$0xff]
          %v1692 = vld [vmem:[#allocation2 + $0x60] sm:$0xff]
          %v1693 = vld [vmem:[#allocation2 + $0x68] sm:$0xff]
          %v1694 = vld [vmem:[#allocation2 + $0x70] sm:$0xff]
          %v1695 = vld [vmem:[#allocation2 + $0x78] sm:$0xff]
          %v1696 = vld [vmem:[#allocation2 + $0x80] sm:$0xff]
          %v1697 = vld [vmem:[#allocation2 + $0x88] sm:$0xff]
          %v1698 = vld [vmem:[#allocation2 + $0x90] sm:$0xff]
          %v1699 = vld [vmem:[#allocation2 + $0x98] sm:$0xff]
          %v1700 = vld [vmem:[#allocation2 + $0xa0] sm:$0xff]
          %v1701 = vld [vmem:[#allocation2 + $0xa8] sm:$0xff]
          %v1702 = vld [vmem:[#allocation2 + $0xb0] sm:$0xff]
          %v1703 = vld [vmem:[#allocation2 + $0xb8] sm:$0xff]
          %v1704 = vld [vmem:[#allocation2 + $0xc0] sm:$0xff]
          %v1705 = vld [vmem:[#allocation2 + $0xc8] sm:$0xff]
          %v1706 = vld [vmem:[#allocation2 + $0xd0] sm:$0xff]
          %v1707 = vld [vmem:[#allocation2 + $0xd8] sm:$0xff]
          %v1708 = vld [vmem:[#allocation2 + $0xe0] sm:$0xff]
          %v1709 = vld [vmem:[#allocation2 + $0xe8] sm:$0xff]
          %v1710 = vld [vmem:[#allocation2 + $0xf0] sm:$0xff]
          %v1711 = vld [vmem:[#allocation2 + $0xf8] sm:$0xff]
          %v1712 = vld [vmem:[%s334] sm:$0xf]
          %v1713 = vld [vmem:[%s334 + $0x4] sm:$0xf]
          %v1714 = vld [vmem:[%s334 + $0x8] sm:$0xf]
          %v1715 = vld [vmem:[%s334 + $0xc] sm:$0xf]
          %v1716 = vld [vmem:[%s334 + $0x10] sm:$0xf]
          %v1717 = vld [vmem:[%s334 + $0x14] sm:$0xf]
          %v1718 = vld [vmem:[%s334 + $0x18] sm:$0xf]
          %v1719 = vld [vmem:[%s334 + $0x1c] sm:$0xf]
          %v1720 = vld [vmem:[%s334 + $0x20] sm:$0xf]
          %v1721 = vld [vmem:[%s334 + $0x24] sm:$0xf]
          %v1722 = vld [vmem:[%s334 + $0x28] sm:$0xf]
          %v1723 = vld [vmem:[%s334 + $0x2c] sm:$0xf]
          %v1724 = vld [vmem:[%s334 + $0x30] sm:$0xf]
          %v1725 = vld [vmem:[%s334 + $0x34] sm:$0xf]
          %v1726 = vld [vmem:[%s334 + $0x38] sm:$0xf]
          %v1727 = vld [vmem:[%s334 + $0x3c] sm:$0xf]
          %v1728 = vld [vmem:[%s334 + $0x40] sm:$0xf]
          %v1729 = vld [vmem:[%s334 + $0x44] sm:$0xf]
          %v1730 = vld [vmem:[%s334 + $0x48] sm:$0xf]
          %v1731 = vld [vmem:[%s334 + $0x4c] sm:$0xf]
          %v1732 = vld [vmem:[%s334 + $0x50] sm:$0xf]
          %v1733 = vld [vmem:[%s334 + $0x54] sm:$0xf]
          %v1734 = vld [vmem:[%s334 + $0x58] sm:$0xf]
          %v1735 = vld [vmem:[%s334 + $0x5c] sm:$0xf]
          %v1736 = vld [vmem:[%s334 + $0x60] sm:$0xf]
          %v1737 = vld [vmem:[%s334 + $0x64] sm:$0xf]
          %v1738 = vld [vmem:[%s334 + $0x68] sm:$0xf]
          %v1739 = vld [vmem:[%s334 + $0x6c] sm:$0xf]
          %v1740 = vld [vmem:[%s334 + $0x70] sm:$0xf]
          %v1741 = vld [vmem:[%s334 + $0x74] sm:$0xf]
          %v1742 = vld [vmem:[%s334 + $0x78] sm:$0xf]
          %v1743 = vld [vmem:[%s334 + $0x7c] sm:$0xf]
          %v1744 = vld [vmem:[%s334 + $0x80] sm:$0xf]
          %v1745 = vld [vmem:[%s334 + $0x84] sm:$0xf]
          %v1746 = vld [vmem:[%s334 + $0x88] sm:$0xf]
          %v1747 = vld [vmem:[%s334 + $0x8c] sm:$0xf]
          %v1748 = vld [vmem:[%s334 + $0x90] sm:$0xf]
          %v1749 = vld [vmem:[%s334 + $0x94] sm:$0xf]
          %v1750 = vld [vmem:[%s334 + $0x98] sm:$0xf]
          %v1751 = vld [vmem:[%s334 + $0x9c] sm:$0xf]
          %v1752 = vld [vmem:[%s334 + $0xa0] sm:$0xf]
          %v1753 = vld [vmem:[%s334 + $0xa4] sm:$0xf]
          %v1754 = vld [vmem:[%s334 + $0xa8] sm:$0xf]
          %v1755 = vld [vmem:[%s334 + $0xac] sm:$0xf]
          %v1756 = vld [vmem:[%s334 + $0xb0] sm:$0xf]
          %v1757 = vld [vmem:[%s334 + $0xb4] sm:$0xf]
          %v1758 = vld [vmem:[%s334 + $0xb8] sm:$0xf]
          %v1759 = vld [vmem:[%s334 + $0xbc] sm:$0xf]
          %v1760 = vld [vmem:[%s334 + $0xc0] sm:$0xf]
          %v1761 = vld [vmem:[%s334 + $0xc4] sm:$0xf]
          %v1762 = vld [vmem:[%s334 + $0xc8] sm:$0xf]
          %v1763 = vld [vmem:[%s334 + $0xcc] sm:$0xf]
          %v1764 = vld [vmem:[%s334 + $0xd0] sm:$0xf]
          %v1765 = vld [vmem:[%s334 + $0xd4] sm:$0xf]
          %v1766 = vld [vmem:[%s334 + $0xd8] sm:$0xf]
          %v1767 = vld [vmem:[%s334 + $0xdc] sm:$0xf]
          %v1768 = vld [vmem:[%s334 + $0xe0] sm:$0xf]
          %v1769 = vld [vmem:[%s334 + $0xe4] sm:$0xf]
          %v1770 = vld [vmem:[%s334 + $0xe8] sm:$0xf]
          %v1771 = vld [vmem:[%s334 + $0xec] sm:$0xf]
          %v1772 = vld [vmem:[%s334 + $0xf0] sm:$0xf]
          %v1773 = vld [vmem:[%s334 + $0xf4] sm:$0xf]
          %v1774 = vld [vmem:[%s334 + $0xf8] sm:$0xf]
          %v1775 = vld [vmem:[%s334 + $0xfc] sm:$0xf]
          %v1776 = vunpack.c.l.bf16 %v1712
          %v1777 = vunpack.c.l.bf16 %v1713
          %v1778 = vunpack.c.l.bf16 %v1714
          %v1779 = vunpack.c.l.bf16 %v1715
          %v1780 = vunpack.c.l.bf16 %v1716
          %v1781 = vunpack.c.l.bf16 %v1717
          %v1782 = vunpack.c.l.bf16 %v1718
          %v1783 = vunpack.c.l.bf16 %v1719
          %v1784 = vunpack.c.l.bf16 %v1720
          %v1785 = vunpack.c.l.bf16 %v1721
          %v1786 = vunpack.c.l.bf16 %v1722
          %v1787 = vunpack.c.l.bf16 %v1723
          %v1788 = vunpack.c.l.bf16 %v1724
          %v1789 = vunpack.c.l.bf16 %v1725
          %v1790 = vunpack.c.l.bf16 %v1726
          %v1791 = vunpack.c.l.bf16 %v1727
          %v1792 = vunpack.c.l.bf16 %v1728
          %v1793 = vunpack.c.l.bf16 %v1729
          %v1794 = vunpack.c.l.bf16 %v1730
          %v1795 = vunpack.c.l.bf16 %v1731
          %v1796 = vunpack.c.l.bf16 %v1732
          %v1797 = vunpack.c.l.bf16 %v1733
          %v1798 = vunpack.c.l.bf16 %v1734
          %v1799 = vunpack.c.l.bf16 %v1735
          %v1800 = vunpack.c.l.bf16 %v1736
          %v1801 = vunpack.c.l.bf16 %v1737
          %v1802 = vunpack.c.l.bf16 %v1738
          %v1803 = vunpack.c.l.bf16 %v1739
          %v1804 = vunpack.c.l.bf16 %v1740
          %v1805 = vunpack.c.l.bf16 %v1741
          %v1806 = vunpack.c.l.bf16 %v1742
          %v1807 = vunpack.c.l.bf16 %v1743
          %v1808 = vunpack.c.l.bf16 %v1744
          %v1809 = vunpack.c.l.bf16 %v1745
          %v1810 = vunpack.c.l.bf16 %v1746
          %v1811 = vunpack.c.l.bf16 %v1747
          %v1812 = vunpack.c.l.bf16 %v1748
          %v1813 = vunpack.c.l.bf16 %v1749
          %v1814 = vunpack.c.l.bf16 %v1750
          %v1815 = vunpack.c.l.bf16 %v1751
          %v1816 = vunpack.c.l.bf16 %v1752
          %v1817 = vunpack.c.l.bf16 %v1753
          %v1818 = vunpack.c.l.bf16 %v1754
          %v1819 = vunpack.c.l.bf16 %v1755
          %v1820 = vunpack.c.l.bf16 %v1756
          %v1821 = vunpack.c.l.bf16 %v1757
          %v1822 = vunpack.c.l.bf16 %v1758
          %v1823 = vunpack.c.l.bf16 %v1759
          %v1824 = vunpack.c.l.bf16 %v1760
          %v1825 = vunpack.c.l.bf16 %v1761
          %v1826 = vunpack.c.l.bf16 %v1762
          %v1827 = vunpack.c.l.bf16 %v1763
          %v1828 = vunpack.c.l.bf16 %v1764
          %v1829 = vunpack.c.l.bf16 %v1765
          %v1830 = vunpack.c.l.bf16 %v1766
          %v1831 = vunpack.c.l.bf16 %v1767
          %v1832 = vunpack.c.l.bf16 %v1768
          %v1833 = vunpack.c.l.bf16 %v1769
          %v1834 = vunpack.c.l.bf16 %v1770
          %v1835 = vunpack.c.l.bf16 %v1771
          %v1836 = vunpack.c.l.bf16 %v1772
          %v1837 = vunpack.c.l.bf16 %v1773
          %v1838 = vunpack.c.l.bf16 %v1774
          %v1839 = vunpack.c.l.bf16 %v1775
          %1840 = vmatprep.subr.mxu0 0.0
          %1841 = vmatpush1.msra.mxu0 %v1776
          %1842 = vmatprep.subr.mxu0 0.0
          %1843 = vmatpush1.msra.mxu0 %v1777
          %1844 = vmatprep.subr.mxu0 0.0
          %1845 = vmatpush1.msra.mxu0 %v1778
          %1846 = vmatprep.subr.mxu0 0.0
          %1847 = vmatpush1.msra.mxu0 %v1779
          %1848 = vmatprep.subr.mxu0 0.0
          %1849 = vmatpush1.msra.mxu0 %v1780
          %1850 = vmatprep.subr.mxu0 0.0
          %1851 = vmatpush1.msra.mxu0 %v1781
          %1852 = vmatprep.subr.mxu0 0.0
          %1853 = vmatpush1.msra.mxu0 %v1782
          %1854 = vmatprep.subr.mxu0 0.0
          %1855 = vmatpush1.msra.mxu0 %v1783
          %1856 = vmatprep.subr.mxu0 0.0
          %1857 = vmatpush1.msra.mxu0 %v1784
          %1858 = vmatprep.subr.mxu0 0.0
          %1859 = vmatpush1.msra.mxu0 %v1785
          %1860 = vmatprep.subr.mxu0 0.0
          %1861 = vmatpush1.msra.mxu0 %v1786
          %1862 = vmatprep.subr.mxu0 0.0
          %1863 = vmatpush1.msra.mxu0 %v1787
          %1864 = vmatprep.subr.mxu0 0.0
          %1865 = vmatpush1.msra.mxu0 %v1788
          %1866 = vmatprep.subr.mxu0 0.0
          %1867 = vmatpush1.msra.mxu0 %v1789
          %1868 = vmatprep.subr.mxu0 0.0
          %1869 = vmatpush1.msra.mxu0 %v1790
          %1870 = vmatprep.subr.mxu0 0.0
          %1871 = vmatpush1.msra.mxu0 %v1791
          %1872 = vmatprep.subr.mxu0 0.0
          %1873 = vmatpush1.msra.mxu0 %v1792
          %1874 = vmatprep.subr.mxu0 0.0
          %1875 = vmatpush1.msra.mxu0 %v1793
          %1876 = vmatprep.subr.mxu0 0.0
          %1877 = vmatpush1.msra.mxu0 %v1794
          %1878 = vmatprep.subr.mxu0 0.0
          %1879 = vmatpush1.msra.mxu0 %v1795
          %1880 = vmatprep.subr.mxu0 0.0
          %1881 = vmatpush1.msra.mxu0 %v1796
          %1882 = vmatprep.subr.mxu0 0.0
          %1883 = vmatpush1.msra.mxu0 %v1797
          %1884 = vmatprep.subr.mxu0 0.0
          %1885 = vmatpush1.msra.mxu0 %v1798
          %1886 = vmatprep.subr.mxu0 0.0
          %1887 = vmatpush1.msra.mxu0 %v1799
          %1888 = vmatprep.subr.mxu0 0.0
          %1889 = vmatpush1.msra.mxu0 %v1800
          %1890 = vmatprep.subr.mxu0 0.0
          %1891 = vmatpush1.msra.mxu0 %v1801
          %1892 = vmatprep.subr.mxu0 0.0
          %1893 = vmatpush1.msra.mxu0 %v1802
          %1894 = vmatprep.subr.mxu0 0.0
          %1895 = vmatpush1.msra.mxu0 %v1803
          %1896 = vmatprep.subr.mxu0 0.0
          %1897 = vmatpush1.msra.mxu0 %v1804
          %1898 = vmatprep.subr.mxu0 0.0
          %1899 = vmatpush1.msra.mxu0 %v1805
          %1900 = vmatprep.subr.mxu0 0.0
          %1901 = vmatpush1.msra.mxu0 %v1806
          %1902 = vmatprep.subr.mxu0 0.0
          %1903 = vmatpush1.msra.mxu0 %v1807
          %1904 = vmatprep.mubr.f32.mxu0 %v1681
          %1905 = vmatmul.mubr.f32.gmra.mrb[0].mxu0 %v1680
          %v1906 = vpop.f32.mrb[0].mxu0
          %v1907 = vadd.f32 0.0, %v1906
          %v1908 = vpop.f32.mrb[0].mxu0
          %1909 = vmatprep.mubr.f32.mxu0 %v1685
          %1910 = vmatmul.mubr.f32.gmra.mrb[0].mxu0 %v1684
          %v1911 = vpop.f32.mrb[0].mxu0
          %v1912 = vadd.f32 0.0, %v1911
          %v1913 = vpop.f32.mrb[0].mxu0
          %1914 = vmatprep.mubr.f32.mxu0 %v1689
          %1915 = vmatmul.mubr.f32.gmra.mrb[0].mxu0 %v1688
          %v1916 = vpop.f32.mrb[0].mxu0
          %v1917 = vadd.f32 0.0, %v1916
          %v1918 = vpop.f32.mrb[0].mxu0
          %1919 = vmatprep.mubr.f32.mxu0 %v1693
          %1920 = vmatmul.mubr.f32.gmra.mrb[0].mxu0 %v1692
          %v1921 = vpop.f32.mrb[0].mxu0
          %v1922 = vadd.f32 0.0, %v1921
          %v1923 = vpop.f32.mrb[0].mxu0
          %1924 = vmatprep.mubr.f32.mxu0 %v1697
          %1925 = vmatmul.mubr.f32.gmra.mrb[0].mxu0 %v1696
          %v1926 = vpop.f32.mrb[0].mxu0
          %v1927 = vadd.f32 0.0, %v1926
          %v1928 = vpop.f32.mrb[0].mxu0
          %1929 = vmatprep.mubr.f32.mxu0 %v1701
          %1930 = vmatmul.mubr.f32.gmra.mrb[0].mxu0 %v1700
          %v1931 = vpop.f32.mrb[0].mxu0
          %v1932 = vadd.f32 0.0, %v1931
          %v1933 = vpop.f32.mrb[0].mxu0
          %1934 = vmatprep.mubr.f32.mxu0 %v1705
          %1935 = vmatmul.mubr.f32.gmra.mrb[0].mxu0 %v1704
          %v1936 = vpop.f32.mrb[0].mxu0
          %v1937 = vadd.f32 0.0, %v1936
          %v1938 = vpop.f32.mrb[0].mxu0
          %1939 = vmatprep.mubr.f32.mxu0 %v1709
          %1940 = vmatmul.mubr.f32.gmra.mrb[0].mxu0 %v1708
          %v1941 = vpop.f32.mrb[0].mxu0
          %v1942 = vadd.f32 0.0, %v1941
          %v1943 = vpop.f32.mrb[0].mxu0
          %1944 = vdwg.mxu0
          %1945 = vmatprep.subr.mxu0 0.0
          %1946 = vmatpush1.msra.mxu0 %v1808
          %1947 = vmatprep.subr.mxu0 0.0
          %1948 = vmatpush1.msra.mxu0 %v1809
          %1949 = vmatprep.subr.mxu0 0.0
          %1950 = vmatpush1.msra.mxu0 %v1810
          %1951 = vmatprep.subr.mxu0 0.0
          %1952 = vmatpush1.msra.mxu0 %v1811
          %1953 = vmatprep.subr.mxu0 0.0
          %1954 = vmatpush1.msra.mxu0 %v1812
          %1955 = vmatprep.subr.mxu0 0.0
          %1956 = vmatpush1.msra.mxu0 %v1813
          %1957 = vmatprep.subr.mxu0 0.0
          %1958 = vmatpush1.msra.mxu0 %v1814
          %1959 = vmatprep.subr.mxu0 0.0
          %1960 = vmatpush1.msra.mxu0 %v1815
          %1961 = vmatprep.subr.mxu0 0.0
          %1962 = vmatpush1.msra.mxu0 %v1816
          %1963 = vmatprep.subr.mxu0 0.0
          %1964 = vmatpush1.msra.mxu0 %v1817
          %1965 = vmatprep.subr.mxu0 0.0
          %1966 = vmatpush1.msra.mxu0 %v1818
          %1967 = vmatprep.subr.mxu0 0.0
          %1968 = vmatpush1.msra.mxu0 %v1819
          %1969 = vmatprep.subr.mxu0 0.0
          %1970 = vmatpush1.msra.mxu0 %v1820
          %1971 = vmatprep.subr.mxu0 0.0
          %1972 = vmatpush1.msra.mxu0 %v1821
          %1973 = vmatprep.subr.mxu0 0.0
          %1974 = vmatpush1.msra.mxu0 %v1822
          %1975 = vmatprep.subr.mxu0 0.0
          %1976 = vmatpush1.msra.mxu0 %v1823
          %1977 = vmatprep.subr.mxu0 0.0
          %1978 = vmatpush1.msra.mxu0 %v1824
          %1979 = vmatprep.subr.mxu0 0.0
          %1980 = vmatpush1.msra.mxu0 %v1825
          %1981 = vmatprep.subr.mxu0 0.0
          %1982 = vmatpush1.msra.mxu0 %v1826
          %1983 = vmatprep.subr.mxu0 0.0
          %1984 = vmatpush1.msra.mxu0 %v1827
          %1985 = vmatprep.subr.mxu0 0.0
          %1986 = vmatpush1.msra.mxu0 %v1828
          %1987 = vmatprep.subr.mxu0 0.0
          %1988 = vmatpush1.msra.mxu0 %v1829
          %1989 = vmatprep.subr.mxu0 0.0
          %1990 = vmatpush1.msra.mxu0 %v1830
          %1991 = vmatprep.subr.mxu0 0.0
          %1992 = vmatpush1.msra.mxu0 %v1831
          %1993 = vmatprep.subr.mxu0 0.0
          %1994 = vmatpush1.msra.mxu0 %v1832
          %1995 = vmatprep.subr.mxu0 0.0
          %1996 = vmatpush1.msra.mxu0 %v1833
          %1997 = vmatprep.subr.mxu0 0.0
          %1998 = vmatpush1.msra.mxu0 %v1834
          %1999 = vmatprep.subr.mxu0 0.0
          %2000 = vmatpush1.msra.mxu0 %v1835
          %2001 = vmatprep.subr.mxu0 0.0
          %2002 = vmatpush1.msra.mxu0 %v1836
          %2003 = vmatprep.subr.mxu0 0.0
          %2004 = vmatpush1.msra.mxu0 %v1837
          %2005 = vmatprep.subr.mxu0 0.0
          %2006 = vmatpush1.msra.mxu0 %v1838
          %2007 = vmatprep.subr.mxu0 0.0
          %2008 = vmatpush1.msra.mxu0 %v1839
          %2009 = vmatprep.mubr.f32.mxu0 %v1683
          %2010 = vmatmul.mubr.f32.gmra.mrb[0].mxu0 %v1682
          %v2011 = vpop.f32.mrb[0].mxu0
          %v2012 = vadd.f32 %v1907, %v2011
          %v2013 = vpop.f32.mrb[0].mxu0
          %2014 = vmatprep.mubr.f32.mxu0 %v1687
          %2015 = vmatmul.mubr.f32.gmra.mrb[0].mxu0 %v1686
          %v2016 = vpop.f32.mrb[0].mxu0
          %v2017 = vadd.f32 %v1912, %v2016
          %v2018 = vpop.f32.mrb[0].mxu0
          %2019 = vmatprep.mubr.f32.mxu0 %v1691
          %2020 = vmatmul.mubr.f32.gmra.mrb[0].mxu0 %v1690
          %v2021 = vpop.f32.mrb[0].mxu0
          %v2022 = vadd.f32 %v1917, %v2021
          %v2023 = vpop.f32.mrb[0].mxu0
          %2024 = vmatprep.mubr.f32.mxu0 %v1695
          %2025 = vmatmul.mubr.f32.gmra.mrb[0].mxu0 %v1694
          %v2026 = vpop.f32.mrb[0].mxu0
          %v2027 = vadd.f32 %v1922, %v2026
          %v2028 = vpop.f32.mrb[0].mxu0
          %2029 = vmatprep.mubr.f32.mxu0 %v1699
          %2030 = vmatmul.mubr.f32.gmra.mrb[0].mxu0 %v1698
          %v2031 = vpop.f32.mrb[0].mxu0
          %v2032 = vadd.f32 %v1927, %v2031
          %v2033 = vpop.f32.mrb[0].mxu0
          %2034 = vmatprep.mubr.f32.mxu0 %v1703
          %2035 = vmatmul.mubr.f32.gmra.mrb[0].mxu0 %v1702
          %v2036 = vpop.f32.mrb[0].mxu0
          %v2037 = vadd.f32 %v1932, %v2036
          %v2038 = vpop.f32.mrb[0].mxu0
          %2039 = vmatprep.mubr.f32.mxu0 %v1707
          %2040 = vmatmul.mubr.f32.gmra.mrb[0].mxu0 %v1706
          %v2041 = vpop.f32.mrb[0].mxu0
          %v2042 = vadd.f32 %v1937, %v2041
          %v2043 = vpop.f32.mrb[0].mxu0
          %2044 = vmatprep.mubr.f32.mxu0 %v1711
          %2045 = vmatmul.mubr.f32.gmra.mrb[0].mxu0 %v1710
          %v2046 = vpop.f32.mrb[0].mxu0
          %v2047 = vadd.f32 %v1942, %v2046
          %v2048 = vpop.f32.mrb[0].mxu0
          %2049 = vdwg.mxu0
          %p2050 = scmp.eq.s32.totalorder %s33, 0
          %p2051 = scmp.eq.s32.totalorder %s34, 0
          %p2052 = pnand %p2050, %p2051
          %p2053 = pneg %p2052
          // Predicated region
          $region69: #{tpu_custom_call.1} parent=67 // pred_check
            _
          $region70: #{tpu_custom_call.1} parent=67 // pred_check_branch
            %2055 = sbr.rel (%p2052) target = $region72
          $region71: #{tpu_custom_call.1} parent=67 // pred_region
            %2056 = vst [vmem:[#allocation3] sm:$0xff] %v2012
            %2057 = vst [vmem:[#allocation3 + $0x8] sm:$0xff] %v2017
            %2058 = vst [vmem:[#allocation3 + $0x10] sm:$0xff] %v2022
            %2059 = vst [vmem:[#allocation3 + $0x18] sm:$0xff] %v2027
            %2060 = vst [vmem:[#allocation3 + $0x20] sm:$0xff] %v2032
            %2061 = vst [vmem:[#allocation3 + $0x28] sm:$0xff] %v2037
            %2062 = vst [vmem:[#allocation3 + $0x30] sm:$0xff] %v2042
            %2063 = vst [vmem:[#allocation3 + $0x38] sm:$0xff] %v2047
          $region72: #{tpu_custom_call.1} parent=67 // pred_fallthru
            _
          %p2064 = pneg %p2053
          // Predicated region
          $region73: #{tpu_custom_call.1} parent=67 // pred_check
            _
          $region74: #{tpu_custom_call.1} parent=67 // pred_check_branch
            %2066 = sbr.rel (%p2053) target = $region76
          $region75: #{tpu_custom_call.1} parent=67 // pred_region
            %v2067 = vld [vmem:[#allocation3] sm:$0xff]
            %v2068 = vld [vmem:[#allocation3 + $0x8] sm:$0xff]
            %v2069 = vld [vmem:[#allocation3 + $0x10] sm:$0xff]
            %v2070 = vld [vmem:[#allocation3 + $0x18] sm:$0xff]
            %v2071 = vld [vmem:[#allocation3 + $0x20] sm:$0xff]
            %v2072 = vld [vmem:[#allocation3 + $0x28] sm:$0xff]
            %v2073 = vld [vmem:[#allocation3 + $0x30] sm:$0xff]
            %v2074 = vld [vmem:[#allocation3 + $0x38] sm:$0xff]
            %v2075 = vadd.f32 %v2067, %v2012
            %v2076 = vadd.f32 %v2068, %v2017
            %v2077 = vadd.f32 %v2069, %v2022
            %v2078 = vadd.f32 %v2070, %v2027
            %v2079 = vadd.f32 %v2071, %v2032
            %v2080 = vadd.f32 %v2072, %v2037
            %v2081 = vadd.f32 %v2073, %v2042
            %v2082 = vadd.f32 %v2074, %v2047
            %2083 = vst [vmem:[#allocation3] sm:$0xff] %v2075
            %2084 = vst [vmem:[#allocation3 + $0x8] sm:$0xff] %v2076
            %2085 = vst [vmem:[#allocation3 + $0x10] sm:$0xff] %v2077
            %2086 = vst [vmem:[#allocation3 + $0x18] sm:$0xff] %v2078
            %2087 = vst [vmem:[#allocation3 + $0x20] sm:$0xff] %v2079
            %2088 = vst [vmem:[#allocation3 + $0x28] sm:$0xff] %v2080
            %2089 = vst [vmem:[#allocation3 + $0x30] sm:$0xff] %v2081
            %2090 = vst [vmem:[#allocation3 + $0x38] sm:$0xff] %v2082
          $region76: #{tpu_custom_call.1} parent=67 // pred_fallthru
            _
        $region68: #{tpu_custom_call.1} parent=39 // pred_fallthru
          _
        %p2091 = scmp.eq.s32.totalorder %s33, 1
        %p2092 = scmp.eq.s32.totalorder %s34, 0
        %p2093 = pnand %p2092, %p1541
        %p2094 = pneg %p2093
        %p2095 = pnand %p2091, %p2094
        %p2096 = pneg %p2095
        // Predicated region
        $region77: #{tpu_custom_call.1} parent=39 // pred_check
          _
        $region78: #{tpu_custom_call.1} parent=39 // pred_check_branch
          %2098 = sbr.rel (%p2095) target = $region80
        $region79: #{tpu_custom_call.1} parent=39 // pred_region
          %v2099 = vld [vmem:[#allocation3] sm:$0xff]
          %v2100 = vld [vmem:[#allocation3 + $0x8] sm:$0xff]
          %v2101 = vld [vmem:[#allocation3 + $0x10] sm:$0xff]
          %v2102 = vld [vmem:[#allocation3 + $0x18] sm:$0xff]
          %v2103 = vld [vmem:[#allocation3 + $0x20] sm:$0xff]
          %v2104 = vld [vmem:[#allocation3 + $0x28] sm:$0xff]
          %v2105 = vld [vmem:[#allocation3 + $0x30] sm:$0xff]
          %v2106 = vld [vmem:[#allocation3 + $0x38] sm:$0xff]
          %v2107 = vld [vmem:[#allocation10] sm:$0xff]
          %v2108 = vld [vmem:[#allocation10 + $0x8] sm:$0xff]
          %v2109 = vld [vmem:[#allocation10 + $0x10] sm:$0xff]
          %v2110 = vld [vmem:[#allocation10 + $0x18] sm:$0xff]
          %v2111 = vld [vmem:[#allocation10 + $0x20] sm:$0xff]
          %v2112 = vld [vmem:[#allocation10 + $0x28] sm:$0xff]
          %v2113 = vld [vmem:[#allocation10 + $0x30] sm:$0xff]
          %v2114 = vld [vmem:[#allocation10 + $0x38] sm:$0xff]
          %v2115 = vld [vmem:[#allocation10 + $0x40] sm:$0xff]
          %v2116 = vld [vmem:[#allocation10 + $0x48] sm:$0xff]
          %v2117 = vld [vmem:[#allocation10 + $0x50] sm:$0xff]
          %v2118 = vld [vmem:[#allocation10 + $0x58] sm:$0xff]
          %v2119 = vld [vmem:[#allocation10 + $0x60] sm:$0xff]
          %v2120 = vld [vmem:[#allocation10 + $0x68] sm:$0xff]
          %v2121 = vld [vmem:[#allocation10 + $0x70] sm:$0xff]
          %v2122 = vld [vmem:[#allocation10 + $0x78] sm:$0xff]
          %v2123 = vld [vmem:[%s4] sm:$0x1]
          %v2125 = vlaneseq
          %v2126 = vshrl.u32 %v2125, 7
          %v2127 = vsub.s32 0, %v2126
          %v2128 = vrot.slane %v2123, %v2127
          %2130 = vmatprep.subr.mxu0 0.0
          %2131 = vmatpush1.msra.mxu0 %v2107
          %2132 = vmatprep.subr.mxu0 0.0
          %2133 = vmatpush1.msra.mxu0 %v2108
          %2134 = vmatprep.subr.mxu0 0.0
          %2135 = vmatpush1.msra.mxu0 %v2109
          %2136 = vmatprep.subr.mxu0 0.0
          %2137 = vmatpush1.msra.mxu0 %v2110
          %2138 = vmatprep.subr.mxu0 0.0
          %2139 = vmatpush1.msra.mxu0 %v2111
          %2140 = vmatprep.subr.mxu0 0.0
          %2141 = vmatpush1.msra.mxu0 %v2112
          %2142 = vmatprep.subr.mxu0 0.0
          %2143 = vmatpush1.msra.mxu0 %v2113
          %2144 = vmatprep.subr.mxu0 0.0
          %2145 = vmatpush1.msra.mxu0 %v2114
          %2146 = vmatprep.subr.mxu0 0.0
          %2147 = vmatpush1.msra.mxu0 %v2115
          %2148 = vmatprep.subr.mxu0 0.0
          %2149 = vmatpush1.msra.mxu0 %v2116
          %2150 = vmatprep.subr.mxu0 0.0
          %2151 = vmatpush1.msra.mxu0 %v2117
          %2152 = vmatprep.subr.mxu0 0.0
          %2153 = vmatpush1.msra.mxu0 %v2118
          %2154 = vmatprep.subr.mxu0 0.0
          %2155 = vmatpush1.msra.mxu0 %v2119
          %2156 = vmatprep.subr.mxu0 0.0
          %2157 = vmatpush1.msra.mxu0 %v2120
          %2158 = vmatprep.subr.mxu0 0.0
          %2159 = vmatpush1.msra.mxu0 %v2121
          %2160 = vmatprep.subr.mxu0 0.0
          %2161 = vmatpush1.msra.mxu0 %v2122
          %2162 = vmatprep.subr.mxu0 0.0
          %2163 = vmatpush1.msra.mxu0 0.0
          %2164 = vmatprep.subr.mxu0 0.0
          %2165 = vmatpush1.msra.mxu0 0.0
          %2166 = vmatprep.subr.mxu0 0.0
          %2167 = vmatpush1.msra.mxu0 0.0
          %2168 = vmatprep.subr.mxu0 0.0
          %2169 = vmatpush1.msra.mxu0 0.0
          %2170 = vmatprep.subr.mxu0 0.0
          %2171 = vmatpush1.msra.mxu0 0.0
          %2172 = vmatprep.subr.mxu0 0.0
          %2173 = vmatpush1.msra.mxu0 0.0
          %2174 = vmatprep.subr.mxu0 0.0
          %2175 = vmatpush1.msra.mxu0 0.0
          %2176 = vmatprep.subr.mxu0 0.0
          %2177 = vmatpush1.msra.mxu0 0.0
          %2178 = vmatprep.subr.mxu0 0.0
          %2179 = vmatpush1.msra.mxu0 0.0
          %2180 = vmatprep.subr.mxu0 0.0
          %2181 = vmatpush1.msra.mxu0 0.0
          %2182 = vmatprep.subr.mxu0 0.0
          %2183 = vmatpush1.msra.mxu0 0.0
          %2184 = vmatprep.subr.mxu0 0.0
          %2185 = vmatpush1.msra.mxu0 0.0
          %2186 = vmatprep.subr.mxu0 0.0
          %2187 = vmatpush1.msra.mxu0 0.0
          %2188 = vmatprep.subr.mxu0 0.0
          %2189 = vmatpush1.msra.mxu0 0.0
          %2190 = vmatprep.subr.mxu0 0.0
          %2191 = vmatpush1.msra.mxu0 0.0
          %2192 = vmatprep.subr.mxu0 0.0
          %2193 = vmatpush1.msra.mxu0 0.0
          %2194 = vmatprep.mubr.f32.mxu0 0.0
          %2195 = vmatmul.mubr.f32.gmra.mrb[0].mxu0 %v2099
          %v2196 = vpop.f32.mrb[0].mxu0
          %v2197 = vadd.f32 %v2128, %v2196
          %v2198 = vpop.f32.mrb[0].mxu0
          %2199 = vmatprep.mubr.f32.mxu0 0.0
          %2200 = vmatmul.mubr.f32.gmra.mrb[0].mxu0 %v2100
          %v2201 = vpop.f32.mrb[0].mxu0
          %v2202 = vadd.f32 %v2128, %v2201
          %v2203 = vpop.f32.mrb[0].mxu0
          %2204 = vmatprep.mubr.f32.mxu0 0.0
          %2205 = vmatmul.mubr.f32.gmra.mrb[0].mxu0 %v2101
          %v2206 = vpop.f32.mrb[0].mxu0
          %v2207 = vadd.f32 %v2128, %v2206
          %v2208 = vpop.f32.mrb[0].mxu0
          %2209 = vmatprep.mubr.f32.mxu0 0.0
          %2210 = vmatmul.mubr.f32.gmra.mrb[0].mxu0 %v2102
          %v2211 = vpop.f32.mrb[0].mxu0
          %v2212 = vadd.f32 %v2128, %v2211
          %v2213 = vpop.f32.mrb[0].mxu0
          %2214 = vmatprep.mubr.f32.mxu0 0.0
          %2215 = vmatmul.mubr.f32.gmra.mrb[0].mxu0 %v2103
          %v2216 = vpop.f32.mrb[0].mxu0
          %v2217 = vadd.f32 %v2128, %v2216
          %v2218 = vpop.f32.mrb[0].mxu0
          %2219 = vmatprep.mubr.f32.mxu0 0.0
          %2220 = vmatmul.mubr.f32.gmra.mrb[0].mxu0 %v2104
          %v2221 = vpop.f32.mrb[0].mxu0
          %v2222 = vadd.f32 %v2128, %v2221
          %v2223 = vpop.f32.mrb[0].mxu0
          %2224 = vmatprep.mubr.f32.mxu0 0.0
          %2225 = vmatmul.mubr.f32.gmra.mrb[0].mxu0 %v2105
          %v2226 = vpop.f32.mrb[0].mxu0
          %v2227 = vadd.f32 %v2128, %v2226
          %v2228 = vpop.f32.mrb[0].mxu0
          %2229 = vmatprep.mubr.f32.mxu0 0.0
          %2230 = vmatmul.mubr.f32.gmra.mrb[0].mxu0 %v2106
          %v2231 = vpop.f32.mrb[0].mxu0
          %v2232 = vadd.f32 %v2128, %v2231
          %v2233 = vpop.f32.mrb[0].mxu0
          %2234 = vdwg.mxu0
          %2235 = vst [vmem:[%s374] sm:$0xff] %v2197
          %2236 = vst [vmem:[%s374 + $0x8] sm:$0xff] %v2202
          %2237 = vst [vmem:[%s374 + $0x10] sm:$0xff] %v2207
          %2238 = vst [vmem:[%s374 + $0x18] sm:$0xff] %v2212
          %2239 = vst [vmem:[%s374 + $0x20] sm:$0xff] %v2217
          %2240 = vst [vmem:[%s374 + $0x28] sm:$0xff] %v2222
          %2241 = vst [vmem:[%s374 + $0x30] sm:$0xff] %v2227
          %2242 = vst [vmem:[%s374 + $0x38] sm:$0xff] %v2232
        $region80: #{tpu_custom_call.1} parent=39 // pred_fallthru
          _
        %s2243 = sand.u32 %s186, 1
        %s2244 = scalar_lea.sflag [#allocation6], %s2243
        %s2245 = sand.u32 %s186, 1
        %s2246 = smul.addr %s2245, 64
        %s2247 = scalar_lea.vmem [#allocation12], %s2246
        // Predicated region
        $region81: #{tpu_custom_call.1} parent=39 // pred_check
          %p2248 = pneg %p196
        $region82: #{tpu_custom_call.1} parent=39 // pred_check_branch
          %2250 = sbr.rel (%p2248) target = $region84
        $region83: #{tpu_custom_call.1} parent=39 // pred_region
          %s2251 = smul.u32 8, %s32
          %s2253 = ssub.s32 1024, 1024
          %2254 = vsyncadd %s2244, %s2253
          %s2255 = smul.addr %s2251, 128
          %s2256 = scalar_lea.hbm %s5, %s2255
          %s2257 = sshll.u32 %s2247, 4
          %s2258 = int_to_ptr.vmem [resolvable:$true] %s2257
          %2263 = dma.vmem_to_hbm [thread:$0]  %s2258, 1024, %s2256, %s2244, 128, 128, 8
        $region84: #{tpu_custom_call.1} parent=39 // pred_fallthru
          _
      $region40: #{tpu_custom_call.1} parent=5 // pred_fallthru
        _
      %p2264 = scmp.le.s32.totalorder 2, %s21
      // Predicated region
      $region85: #{tpu_custom_call.1} parent=5 // pred_check
        %p2265 = pneg %p2264
      $region86: #{tpu_custom_call.1} parent=5 // pred_check_branch
        %2267 = sbr.rel (%p2265) target = $region88
      $region87: #{tpu_custom_call.1} parent=5 // pred_region
        %s2268 = ssub.s32 %s21, 2
        // Predicated region
        $region89: #{tpu_custom_call.1} parent=87 // pred_check
          %p2269 = pneg %p202
        $region90: #{tpu_custom_call.1} parent=87 // pred_check_branch
          %2271 = sbr.rel (%p2269) target = $region92
        $region91: #{tpu_custom_call.1} parent=87 // pred_region
          %s2272 = sand.u32 %s187, 1
          %s2273 = scalar_lea.sflag [#allocation6], %s2272
          %s2274 = sand.u32 %s187, 1
          %s2275 = smul.addr %s2274, 64
          %s2276 = scalar_lea.vmem [#allocation12], %s2275
          %2277 = dma.done %s2273, 1024
        $region92: #{tpu_custom_call.1} parent=87 // pred_fallthru
          _
      $region88: #{tpu_custom_call.1} parent=5 // pred_fallthru
        _
    $region6: #{tpu_custom_call.1} parent=1 // loop_footer
      %s25 = sadd.s32 1, %s21
    $region7: #{tpu_custom_call.1} parent=1 // loop_footer_branch
      %20 = sbr.rel target = $region3
    $region8: #{tpu_custom_call.1} parent=1 // loop_exit
      _
    %2278 = vsyncpa [#allocation5], 1
    %s2279 = scalar_lea.sflag [#allocation5], 1
    %2280 = vsyncpa %s2279, 1
    %2281 = vsyncpa [#allocation8], 1
    %s2282 = scalar_lea.sflag [#allocation8], 1
    %2283 = vsyncpa %s2282, 1
    %2284 = vsyncpa [#allocation11], 1
    %2285 = vsyncpa [#allocation6], 1
    %s2286 = scalar_lea.sflag [#allocation6], 1
    %2287 = vsyncpa %s2286, 1

</llo_original>
